<compile_context>
chip_gen: v5e
topology: v5e:2x2
jax: 0.10.0
libtpu: 0.0.40
codegen_flags: <defaults>
</compile_context>

<pallas_src>
import math
import functools

import jax
import jax.numpy as jnp
from jax.experimental import pallas as pl
from jax.experimental.pallas import tpu as pltpu


# ----------------------------------------------------------------------------
# Pallas kernel: fused  y^T = Lo_w @ relu(Wc @ Xcol + b_conv) + lo_b
#   Xcol   : (27*C, Nt)  bf16  im2col columns for this slab (lane = positions)
#   Wc     : (C, 27*C)   bf16  packed conv weight
#   b_conv : (C, 1)      f32
#   Lo_w   : (Co, C)     bf16
#   lo_b   : (Co, 1)     f32
#   out    : (Co, Nt)    f32   (lane-dense: Nt is a multiple of 128)
# ----------------------------------------------------------------------------
def _conv_relu_lo_kernel(xt_ref, wc_ref, bc_ref, wl_ref, bl_ref, o_ref):
    # 3x3x3 conv == one im2col matmul (bf16 operands, f32 accumulation on MXU)
    h = jnp.dot(wc_ref[...], xt_ref[...], preferred_element_type=jnp.float32)
    # Conv3d bias + ReLU in f32 on the VPU
    h = jnp.maximum(h + bc_ref[...], 0.0)
    # Lo linear (transposed): y^T = Lo_w @ h
    y = jnp.dot(wl_ref[...], h.astype(jnp.bfloat16),
                preferred_element_type=jnp.float32)
    o_ref[...] = y + bl_ref[...]


def conv_relu_lo_pallas(xt, wc_t, bc, wl, bl, *, num_tiles=2):
    """Fused conv(im2col) + ReLU + Linear, transposed layout.

    xt   : (K, N) bf16 with K = 27*C, N = B*Nx*Ny*T
    wc_t : (C, K) bf16, bc: (C, 1) f32, wl: (Co, C) bf16, bl: (Co, 1) f32
    returns (Co, N) f32
    """
    K, N = xt.shape
    Cc = wc_t.shape[0]
    Co = wl.shape[0]

    # Pad the position axis so every tile is a multiple of 128 lanes
    # (unmasked stores) and the grid divides evenly; padded columns are
    # sliced off at the end.
    tile = pl.cdiv(N, num_tiles * 128) * 128
    n_pad = tile * num_tiles
    if n_pad != N:
        xt = jnp.pad(xt, ((0, 0), (0, n_pad - N)))

    flops = 2 * Cc * K * n_pad + 2 * Co * Cc * n_pad
    bytes_accessed = (K * n_pad * 2          # xt (bf16)
                      + Cc * K * 2           # wc_t (bf16)
                      + Co * Cc * 2          # wl (bf16)
                      + (Cc + Co) * 4        # biases (f32)
                      + Co * n_pad * 4)      # output (f32)

    out = pl.pallas_call(
        _conv_relu_lo_kernel,
        out_shape=jax.ShapeDtypeStruct((Co, n_pad), jnp.float32),
        grid=(num_tiles,),
        in_specs=[
            pl.BlockSpec((K, tile), lambda i: (0, i)),    # im2col slab
            pl.BlockSpec((Cc, K), lambda i: (0, 0)),      # packed conv weight
            pl.BlockSpec((Cc, 1), lambda i: (0, 0)),      # conv bias
            pl.BlockSpec((Co, Cc), lambda i: (0, 0)),     # Lo weight
            pl.BlockSpec((Co, 1), lambda i: (0, 0)),      # Lo bias
        ],
        out_specs=pl.BlockSpec((Co, tile), lambda i: (0, i)),
        compiler_params=pltpu.CompilerParams(
            dimension_semantics=("parallel",),            # v7x: one slab per TC
            vmem_limit_bytes=32 * 1024 * 1024,            # conservative; fits v7x
        ),
        cost_estimate=pl.CostEstimate(
            flops=flops, transcendentals=0, bytes_accessed=bytes_accessed),
    )(xt, wc_t, bc, wl, bl)
    return out[:, :N]


# ----------------------------------------------------------------------------
# Forward pass (matches sparseKernel3d.forward semantics)
#   x: (B, Nx, Ny, T, c, ich) -> view (B,Nx,Ny,T,C) -> Conv3d(C,C,3,1,1)+ReLU
#   -> Lo: Linear(C, c*k^2) -> view (B, Nx, Ny, T, c, ich)
# ----------------------------------------------------------------------------
def sparse_kernel3d_forward(x, params):
    B, Nx, Ny, T, c, ich = x.shape
    C = c * ich

    # channels-last slab; bf16 early to halve wrapper-side HBM traffic
    x5 = x.reshape(B, Nx, Ny, T, C).astype(jnp.bfloat16)
    xpad = jnp.pad(x5, ((0, 0), (1, 1), (1, 1), (1, 1), (0, 0)))

    # im2col: 27 shifted views, tap-major / channel-minor feature axis,
    # (b, ix, iy, it)-major column axis.  Zero-FLOP layout plumbing in XLA.
    taps = []
    for kx in range(3):
        for ky in range(3):
            for kt in range(3):
                taps.append(xpad[:, kx:kx + Nx, ky:ky + Ny, kt:kt + T, :])
    xt = jnp.stack(taps, axis=0)                  # (27, B, Nx, Ny, T, C)
    xt = xt.transpose(0, 5, 1, 2, 3, 4)           # (27, C, B, Nx, Ny, T)
    N = B * Nx * Ny * T
    xt = xt.reshape(27 * C, N)                    # (K, N) bf16

    y_t = conv_relu_lo_pallas(xt, params["wc_t"], params["bc"],
                              params["wl"], params["bl"])      # (Co, N) f32

    Co = y_t.shape[0]
    y = y_t.reshape(Co, B, Nx, Ny, T).transpose(1, 2, 3, 4, 0)  # (B,Nx,Ny,T,Co)
    return y.reshape(B, Nx, Ny, T, c, Co // c)


# ----------------------------------------------------------------------------
# Parameter init (PyTorch defaults) + static weight packing (hoisted here,
# not on the hot path, per perf review).
# ----------------------------------------------------------------------------
def init_params(key, k, alpha, c=1):
    Cc = alpha * k * k          # conv in/out channels == Lo input features
    Co = c * k * k              # Lo output features
    k1, k2, k3, k4 = jax.random.split(key, 4)

    # Conv3d default init: kaiming_uniform_(a=sqrt(5)) -> U(-1/sqrt(fan_in), +)
    fan_conv = Cc * 27
    b_conv = 1.0 / math.sqrt(fan_conv)
    conv_w = jax.random.uniform(k1, (Cc, Cc, 3, 3, 3),
                                minval=-b_conv, maxval=b_conv, dtype=jnp.float32)
    conv_b = jax.random.uniform(k2, (Cc,),
                                minval=-b_conv, maxval=b_conv, dtype=jnp.float32)

    # nn.Linear default init
    b_lin = 1.0 / math.sqrt(Cc)
    lo_w = jax.random.uniform(k3, (Co, Cc),
                              minval=-b_lin, maxval=b_lin, dtype=jnp.float32)
    lo_b = jax.random.uniform(k4, (Co,),
                              minval=-b_lin, maxval=b_lin, dtype=jnp.float32)

    # Pack for the fused, transposed kernel:
    #   wc_t[o, ((kx*3+ky)*3+kt)*Cc + ci] = conv_w[o, ci, kx, ky, kt]
    wc_t = conv_w.transpose(0, 2, 3, 4, 1).reshape(Cc, 27 * Cc)
    return {
        "wc_t": wc_t.astype(jnp.bfloat16),        # (Cc, 27*Cc) bf16
        "bc": conv_b.reshape(Cc, 1),              # (Cc, 1) f32
        "wl": lo_w.astype(jnp.bfloat16),          # (Co, Cc) bf16
        "bl": lo_b.reshape(Co, 1),                # (Co, 1) f32
    }


if __name__ == "__main__":
    # Shape algebra of the module requires: c*ich == alpha*k**2 (conv input)
    # and the final view back to (..., c, ich) requires ich == k**2, c == alpha.
    k = 4
    alpha = 2
    c = alpha                 # = 2
    ich = k * k               # = 16  -> conv channels C = c*ich = 32
    B, Nx, Ny, T = 2, 8, 8, 8  # N = B*Nx*Ny*T = 1024 flattened positions

    key = jax.random.PRNGKey(0)
    pkey, xkey = jax.random.split(key)
    params = init_params(pkey, k, alpha, c)
    x = jax.random.normal(xkey, (B, Nx, Ny, T, c, ich), dtype=jnp.float32)

    fwd = jax.jit(sparse_kernel3d_forward)
    y = fwd(x, params)
    jax.block_until_ready(y)

    assert y.shape == (B, Nx, Ny, T, c, ich)
    assert y.dtype == jnp.float32
    assert bool(jnp.isfinite(y).all())
    print("KERNEL_OK")
</pallas_src>

<mosaic_0001>
module attributes {stable_mosaic.version = 11 : i64} {
  func.func @_conv_relu_lo_kernel(%arg0: i32, %arg1: memref<864x512xbf16, #tpu.memory_space<vmem>>, %arg2: memref<32x864xbf16, #tpu.memory_space<vmem>>, %arg3: memref<32x1xf32, #tpu.memory_space<vmem>>, %arg4: memref<32x32xbf16, #tpu.memory_space<vmem>>, %arg5: memref<32x1xf32, #tpu.memory_space<vmem>>, %arg6: memref<32x512xf32, #tpu.memory_space<vmem>>) attributes {dimension_semantics = [#tpu.dimension_semantics<parallel>], iteration_bounds = array<i64: 2>, scalar_prefetch = 0 : i64, scratch_operands = 0 : i64, tpu.core_type = #tpu.core_type<tc>, window_params = [{transform_indices = @transform_0, window_bounds = array<i64: 864, 512>}, {pipeline_mode = #tpu.pipeline_mode<synchronous>, transform_indices = @transform_1, window_bounds = array<i64: 32, 864>}, {pipeline_mode = #tpu.pipeline_mode<synchronous>, transform_indices = @transform_2, window_bounds = array<i64: 32, 1>}, {pipeline_mode = #tpu.pipeline_mode<synchronous>, transform_indices = @transform_3, window_bounds = array<i64: 32, 32>}, {pipeline_mode = #tpu.pipeline_mode<synchronous>, transform_indices = @transform_4, window_bounds = array<i64: 32, 1>}, {transform_indices = @transform_5, window_bounds = array<i64: 32, 512>}]} {
    %c0 = arith.constant 0 : index
    %c0_0 = arith.constant 0 : index
    %0 = vector.load %arg2[%c0, %c0_0] : memref<32x864xbf16, #tpu.memory_space<vmem>>, vector<32x864xbf16>
    %c0_1 = arith.constant 0 : index
    %c0_2 = arith.constant 0 : index
    %1 = vector.load %arg1[%c0_1, %c0_2] : memref<864x512xbf16, #tpu.memory_space<vmem>>, vector<864x512xbf16>
    %cst = arith.constant dense<0.000000e+00> : vector<32x512xf32>
    %2 = tpu.matmul %0, %1, %cst {dimension_numbers = #tpu.dot_dimension_numbers<[1], [0], [0], [1], [0, 0, 1, 1], [], []>} : vector<32x864xbf16>, vector<864x512xbf16>, vector<32x512xf32> -> vector<32x512xf32>
    %c0_3 = arith.constant 0 : index
    %c0_4 = arith.constant 0 : index
    %3 = vector.load %arg3[%c0_3, %c0_4] : memref<32x1xf32, #tpu.memory_space<vmem>>, vector<32x1xf32>
    %4 = vector.broadcast %3 : vector<32x1xf32> to vector<32x512xf32>
    %5 = arith.addf %2, %4 : vector<32x512xf32>
    %cst_5 = arith.constant 0.000000e+00 : f32
    %6 = vector.broadcast %cst_5 : f32 to vector<32x512xf32>
    %7 = arith.maximumf %5, %6 : vector<32x512xf32>
    %c0_6 = arith.constant 0 : index
    %c0_7 = arith.constant 0 : index
    %8 = vector.load %arg4[%c0_6, %c0_7] : memref<32x32xbf16, #tpu.memory_space<vmem>>, vector<32x32xbf16>
    %9 = arith.truncf %7 : vector<32x512xf32> to vector<32x512xbf16>
    %cst_8 = arith.constant dense<0.000000e+00> : vector<32x512xf32>
    %10 = tpu.matmul %8, %9, %cst_8 {dimension_numbers = #tpu.dot_dimension_numbers<[1], [0], [0], [1], [0, 0, 1, 1], [], []>} : vector<32x32xbf16>, vector<32x512xbf16>, vector<32x512xf32> -> vector<32x512xf32>
    %c0_9 = arith.constant 0 : index
    %c0_10 = arith.constant 0 : index
    %11 = vector.load %arg5[%c0_9, %c0_10] : memref<32x1xf32, #tpu.memory_space<vmem>>, vector<32x1xf32>
    %12 = vector.broadcast %11 : vector<32x1xf32> to vector<32x512xf32>
    %13 = arith.addf %10, %12 : vector<32x512xf32>
    %c0_11 = arith.constant 0 : index
    %c0_12 = arith.constant 0 : index
    %14 = vector.load %arg6[%c0_11, %c0_12] : memref<32x512xf32, #tpu.memory_space<vmem>>, vector<32x512xf32>
    tpu.vector_store %arg6[%c0_11, %c0_12], %13 {strides = array<i32>} : memref<32x512xf32, #tpu.memory_space<vmem>>, vector<32x512xf32>,
    return
  }
  func.func @transform_0(%arg0: i32) -> (i32, i32) {
    %c0_i32 = arith.constant 0 : i32
    %c0_i32_0 = arith.constant 0 : i32
    return %c0_i32, %arg0 : i32, i32
  }
  func.func @transform_1(%arg0: i32) -> (i32, i32) {
    %c0_i32 = arith.constant 0 : i32
    %c0_i32_0 = arith.constant 0 : i32
    %c0_i32_1 = arith.constant 0 : i32
    return %c0_i32, %c0_i32_0 : i32, i32
  }
  func.func @transform_2(%arg0: i32) -> (i32, i32) {
    %c0_i32 = arith.constant 0 : i32
    %c0_i32_0 = arith.constant 0 : i32
    %c0_i32_1 = arith.constant 0 : i32
    return %c0_i32, %c0_i32_0 : i32, i32
  }
  func.func @transform_3(%arg0: i32) -> (i32, i32) {
    %c0_i32 = arith.constant 0 : i32
    %c0_i32_0 = arith.constant 0 : i32
    %c0_i32_1 = arith.constant 0 : i32
    return %c0_i32, %c0_i32_0 : i32, i32
  }
  func.func @transform_4(%arg0: i32) -> (i32, i32) {
    %c0_i32 = arith.constant 0 : i32
    %c0_i32_0 = arith.constant 0 : i32
    %c0_i32_1 = arith.constant 0 : i32
    return %c0_i32, %c0_i32_0 : i32, i32
  }
  func.func @transform_5(%arg0: i32) -> (i32, i32) {
    %c0_i32 = arith.constant 0 : i32
    %c0_i32_0 = arith.constant 0 : i32
    return %c0_i32, %arg0 : i32, i32
  }
}

</mosaic_0001>

<llo_original>
// kernel: sparse_kernel3d_forward.1
$region0: #{sparse_kernel3d_forward.1}
  #allocation0 [shape = 'u32[]', space=smem, size = 0x4, offset = 0x4, fixed_abs, tag = 'smem constant byte address 0x4 - core index']
  #allocation1 [shape = 'u32[72,128]{1,0:T(1,128)}', space=vmem, size = 0x9000, scoped, tag = 'internal scratch']
  %s0 = inlined_call_operand.vmem [shape: bf16[864,1024], index: 0, kind: input, shape index: {}]
  %s1 = inlined_call_operand.vmem [shape: bf16[32,864], index: 1, kind: input, shape index: {}]
  %s2 = inlined_call_operand.vmem [shape: f32[32,1], index: 2, kind: input, shape index: {}]
  %s3 = inlined_call_operand.vmem [shape: bf16[32,32], index: 3, kind: input, shape index: {}]
  %s4 = inlined_call_operand.vmem [shape: f32[32,1], index: 4, kind: input, shape index: {}]
  %s5 = inlined_call_operand.vmem [shape: f32[32,1024], index: 5, kind: output, shape index: {}]
  %s6 = sld [smem:[#allocation0]]
  $region95: #{sparse_kernel3d_forward.1} parent=0
    _
  %s8 = ssub.s32 1, %s6
  %s9 = scalar_select 0, %s8, %s6
  $region1: #{sparse_kernel3d_forward.1} parent=0
    #allocation2 [shape = 'u8[1769472]{0}', space=vmem, size = 0x1b0000, scoped, tag = 'input window, operand 0']
    #allocation3 [shape = 'u8[131072]{0}', space=vmem, size = 0x20000, scoped, tag = 'output window, operand 0']
    loop: start=0, step=1, limit=4
    $region2: #{sparse_kernel3d_forward.1} parent=1 // loop_pre_header
      _
    $region3: #{sparse_kernel3d_forward.1} parent=1 // loop_header
      %s11 = sphi 0, %s15
      %p12 = scmp.ge.s32.totalorder %s11, 4
      %s21 = sphi 0, %s23
      %s24 = sphi 0, %s21
      %s25 = sphi 0, %s24
      %s41 = sphi 0, %s25
      %s45 = sphi 0, %s45
      %s47 = sphi 0, %s45
      %s48 = sphi 0, %s47
      %s62 = sphi 0, %s48
      %s66 = sphi 0, %s66
      %s68 = sphi 0, %s66
      %s69 = sphi 0, %s68
      %s83 = sphi 0, %s69
      %s87 = sphi 0, %s87
      %s89 = sphi 0, %s87
      %s90 = sphi 0, %s89
      %s104 = sphi 0, %s90
      %s108 = sphi 0, %s108
      %s110 = sphi 0, %s108
      %s111 = sphi 0, %s110
      %s125 = sphi 0, %s111
      %s131 = sphi 0, %s133
      %s134 = sphi 0, %s131
      %s135 = sphi 0, %s134
      %s151 = sphi 0, %s135
    $region4: #{sparse_kernel3d_forward.1} parent=1 // loop_header_branch
      %14 = sbr.rel (%p12) target = $region8
    $region5: #{sparse_kernel3d_forward.1} parent=1 // loop_body
      %s16 = ssub.s32 %s11, 1
      %s17 = ssub.s32 %s11, 2
      %s18 = sadd.s32 %s11, 1
      %s19 = ssub.s32 %s11, %s18
      %p20 = scmp.eq.s32.totalorder %s19, 0
      %s22 = sadd.s32 %s21, 1
      %s23 = scalar_select %p20, %s21, %s22
      %p26 = pneg %p20
      %p27 = scmp.eq.s32.totalorder %s11, 1
      %p28 = por %p26, %p27
      %p29 = scmp.ne.s32.totalorder %s21, %s24
      %p30 = scmp.eq.s32.totalorder %s11, 0
      %p31 = por %p29, %p30
      %p32 = scmp.ne.s32.totalorder %s21, %s24
      %p33 = scmp.eq.s32.totalorder %s16, 1
      %p34 = por %p32, %p33
      %p35 = scmp.ne.s32.totalorder %s24, %s25
      %p36 = scmp.eq.s32.totalorder %s16, 0
      %p37 = por %p35, %p36
      %p38 = scmp.ne.s32.totalorder %s24, %s25
      %p39 = scmp.eq.s32.totalorder %s17, 1
      %p40 = por %p38, %p39
      %p42 = scmp.ne.s32.totalorder %s25, %s41
      %p43 = scmp.eq.s32.totalorder %s17, 0
      %p44 = por %p42, %p43
      %s46 = sadd.s32 %s45, 1
      %p49 = scmp.eq.s32.totalorder %s11, 1
      %p50 = scmp.ne.s32.totalorder %s45, %s47
      %p51 = scmp.eq.s32.totalorder %s11, 0
      %p52 = por %p50, %p51
      %p53 = scmp.ne.s32.totalorder %s45, %s47
      %p54 = scmp.eq.s32.totalorder %s16, 1
      %p55 = por %p53, %p54
      %p56 = scmp.ne.s32.totalorder %s47, %s48
      %p57 = scmp.eq.s32.totalorder %s16, 0
      %p58 = por %p56, %p57
      %p59 = scmp.ne.s32.totalorder %s47, %s48
      %p60 = scmp.eq.s32.totalorder %s17, 1
      %p61 = por %p59, %p60
      %p63 = scmp.ne.s32.totalorder %s48, %s62
      %p64 = scmp.eq.s32.totalorder %s17, 0
      %p65 = por %p63, %p64
      %s67 = sadd.s32 %s66, 1
      %p70 = scmp.eq.s32.totalorder %s11, 1
      %p71 = scmp.ne.s32.totalorder %s66, %s68
      %p72 = scmp.eq.s32.totalorder %s11, 0
      %p73 = por %p71, %p72
      %p74 = scmp.ne.s32.totalorder %s66, %s68
      %p75 = scmp.eq.s32.totalorder %s16, 1
      %p76 = por %p74, %p75
      %p77 = scmp.ne.s32.totalorder %s68, %s69
      %p78 = scmp.eq.s32.totalorder %s16, 0
      %p79 = por %p77, %p78
      %p80 = scmp.ne.s32.totalorder %s68, %s69
      %p81 = scmp.eq.s32.totalorder %s17, 1
      %p82 = por %p80, %p81
      %p84 = scmp.ne.s32.totalorder %s69, %s83
      %p85 = scmp.eq.s32.totalorder %s17, 0
      %p86 = por %p84, %p85
      %s88 = sadd.s32 %s87, 1
      %p91 = scmp.eq.s32.totalorder %s11, 1
      %p92 = scmp.ne.s32.totalorder %s87, %s89
      %p93 = scmp.eq.s32.totalorder %s11, 0
      %p94 = por %p92, %p93
      %p95 = scmp.ne.s32.totalorder %s87, %s89
      %p96 = scmp.eq.s32.totalorder %s16, 1
      %p97 = por %p95, %p96
      %p98 = scmp.ne.s32.totalorder %s89, %s90
      %p99 = scmp.eq.s32.totalorder %s16, 0
      %p100 = por %p98, %p99
      %p101 = scmp.ne.s32.totalorder %s89, %s90
      %p102 = scmp.eq.s32.totalorder %s17, 1
      %p103 = por %p101, %p102
      %p105 = scmp.ne.s32.totalorder %s90, %s104
      %p106 = scmp.eq.s32.totalorder %s17, 0
      %p107 = por %p105, %p106
      %s109 = sadd.s32 %s108, 1
      %p112 = scmp.eq.s32.totalorder %s11, 1
      %p113 = scmp.ne.s32.totalorder %s108, %s110
      %p114 = scmp.eq.s32.totalorder %s11, 0
      %p115 = por %p113, %p114
      %p116 = scmp.ne.s32.totalorder %s108, %s110
      %p117 = scmp.eq.s32.totalorder %s16, 1
      %p118 = por %p116, %p117
      %p119 = scmp.ne.s32.totalorder %s110, %s111
      %p120 = scmp.eq.s32.totalorder %s16, 0
      %p121 = por %p119, %p120
      %p122 = scmp.ne.s32.totalorder %s110, %s111
      %p123 = scmp.eq.s32.totalorder %s17, 1
      %p124 = por %p122, %p123
      %p126 = scmp.ne.s32.totalorder %s111, %s125
      %p127 = scmp.eq.s32.totalorder %s17, 0
      %p128 = por %p126, %p127
      %s129 = ssub.s32 %s11, %s18
      %p130 = scmp.eq.s32.totalorder %s129, 0
      %s132 = sadd.s32 %s131, 1
      %s133 = scalar_select %p130, %s131, %s132
      %p136 = pneg %p130
      %p137 = scmp.eq.s32.totalorder %s11, 1
      %p138 = por %p136, %p137
      %p139 = scmp.ne.s32.totalorder %s131, %s134
      %p140 = scmp.eq.s32.totalorder %s11, 0
      %p141 = por %p139, %p140
      %p142 = scmp.ne.s32.totalorder %s131, %s134
      %p143 = scmp.eq.s32.totalorder %s16, 1
      %p144 = por %p142, %p143
      %p145 = scmp.ne.s32.totalorder %s134, %s135
      %p146 = scmp.eq.s32.totalorder %s16, 0
      %p147 = por %p145, %p146
      %p148 = scmp.ne.s32.totalorder %s134, %s135
      %p149 = scmp.eq.s32.totalorder %s17, 1
      %p150 = por %p148, %p149
      %p152 = scmp.ne.s32.totalorder %s135, %s151
      %p153 = scmp.eq.s32.totalorder %s17, 0
      %p154 = por %p152, %p153
      %p155 = scmp.le.s32.totalorder 1, %s11
      %p156 = scmp.lt.s32.totalorder %s11, 3
      %p157 = pnand %p155, %p156
      %p158 = pneg %p157
      // Predicated region
      $region9: #{sparse_kernel3d_forward.1} parent=5 // pred_check
        _
      $region10: #{sparse_kernel3d_forward.1} parent=5 // pred_check_branch
        %160 = sbr.rel (%p157) target = $region12
      $region11: #{sparse_kernel3d_forward.1} parent=5 // pred_region
        %s161 = ssub.s32 %s11, 1
        // Predicated region
        $region13: #{sparse_kernel3d_forward.1} parent=11 // pred_check
          %p162 = pneg %p58
        $region14: #{sparse_kernel3d_forward.1} parent=11 // pred_check_branch
          %164 = sbr.rel (%p162) target = $region16
        $region15: #{sparse_kernel3d_forward.1} parent=11 // pred_region
          _
        $region16: #{sparse_kernel3d_forward.1} parent=11 // pred_fallthru
          _
        // Predicated region
        $region17: #{sparse_kernel3d_forward.1} parent=11 // pred_check
          %p165 = pneg %p79
        $region18: #{sparse_kernel3d_forward.1} parent=11 // pred_check_branch
          %167 = sbr.rel (%p165) target = $region20
        $region19: #{sparse_kernel3d_forward.1} parent=11 // pred_region
          _
        $region20: #{sparse_kernel3d_forward.1} parent=11 // pred_fallthru
          _
        // Predicated region
        $region21: #{sparse_kernel3d_forward.1} parent=11 // pred_check
          %p168 = pneg %p100
        $region22: #{sparse_kernel3d_forward.1} parent=11 // pred_check_branch
          %170 = sbr.rel (%p168) target = $region24
        $region23: #{sparse_kernel3d_forward.1} parent=11 // pred_region
          _
        $region24: #{sparse_kernel3d_forward.1} parent=11 // pred_fallthru
          _
        // Predicated region
        $region25: #{sparse_kernel3d_forward.1} parent=11 // pred_check
          %p171 = pneg %p121
        $region26: #{sparse_kernel3d_forward.1} parent=11 // pred_check_branch
          %173 = sbr.rel (%p171) target = $region28
        $region27: #{sparse_kernel3d_forward.1} parent=11 // pred_region
          _
        $region28: #{sparse_kernel3d_forward.1} parent=11 // pred_fallthru
          _
      $region12: #{sparse_kernel3d_forward.1} parent=5 // pred_fallthru
        _
      %p174 = scmp.lt.s32.totalorder %s11, 2
      // Predicated region
      $region29: #{sparse_kernel3d_forward.1} parent=5 // pred_check
        %p175 = pneg %p174
      $region30: #{sparse_kernel3d_forward.1} parent=5 // pred_check_branch
        %177 = sbr.rel (%p175) target = $region32
      $region31: #{sparse_kernel3d_forward.1} parent=5 // pred_region
        // Predicated region
        $region33: #{sparse_kernel3d_forward.1} parent=31 // pred_check
          %p178 = pneg %p31
        $region34: #{sparse_kernel3d_forward.1} parent=31 // pred_check_branch
          %180 = sbr.rel (%p178) target = $region36
        $region35: #{sparse_kernel3d_forward.1} parent=31 // pred_region
          %s181 = sand.u32 %s21, 1
          %s182 = sand.u32 %s21, 1
          %s183 = smul.addr %s182, 1728
          %s184 = scalar_lea.vmem [#allocation2], %s183
          %s185 = smul.u32 4, %s11
          %s186 = smul.addr %s185, 4
          %s187 = scalar_lea.vmem %s0, %s186
          // Predicated region
          $region37: #{sparse_kernel3d_forward.1} parent=35 // pred_check
            _
          $region38: #{sparse_kernel3d_forward.1} parent=35 // pred_check_branch
            %189 = sbr.rel (0) target = $region40
          $region39: #{sparse_kernel3d_forward.1} parent=35 // pred_region
            // Predicated region
            $region41: #{sparse_kernel3d_forward.1} parent=39 // pred_check
              _
            $region42: #{sparse_kernel3d_forward.1} parent=39 // pred_check_branch
              %191 = sbr.rel (0) target = $region44
            $region43: #{sparse_kernel3d_forward.1} parent=39 // pred_region
              loop: start=0, step=1, limit=1
              $region45: #{sparse_kernel3d_forward.1} parent=43 // loop_pre_header
                _
              $region46: #{sparse_kernel3d_forward.1} parent=43 // loop_header
                %s193 = sphi 0, %s197
                %p194 = scmp.ge.s32.totalorder %s193, 1
                %s198 = sphi %s187, %s187
                %s199 = sphi %s184, %s184
              $region47: #{sparse_kernel3d_forward.1} parent=43 // loop_header_branch
                %196 = sbr.rel (%p194) target = $region51
              $region48: #{sparse_kernel3d_forward.1} parent=43 // loop_body
                %v200 = vld [vmem:[%s198] sm:$0xff]
                %201 = vst [vmem:[%s199] sm:$0xff] %v200
                %v202 = vld [vmem:[%s198 + $0x8] sm:$0xff]
                %203 = vst [vmem:[%s199 + $0x8] sm:$0xff] %v202
                %v204 = vld [vmem:[%s198 + $0x20] sm:$0xff]
                %205 = vst [vmem:[%s199 + $0x10] sm:$0xff] %v204
                %v206 = vld [vmem:[%s198 + $0x28] sm:$0xff]
                %207 = vst [vmem:[%s199 + $0x18] sm:$0xff] %v206
                %v208 = vld [vmem:[%s198 + $0x40] sm:$0xff]
                %209 = vst [vmem:[%s199 + $0x20] sm:$0xff] %v208
                %v210 = vld [vmem:[%s198 + $0x48] sm:$0xff]
                %211 = vst [vmem:[%s199 + $0x28] sm:$0xff] %v210
                %v212 = vld [vmem:[%s198 + $0x60] sm:$0xff]
                %213 = vst [vmem:[%s199 + $0x30] sm:$0xff] %v212
                %v214 = vld [vmem:[%s198 + $0x68] sm:$0xff]
                %215 = vst [vmem:[%s199 + $0x38] sm:$0xff] %v214
                %v216 = vld [vmem:[%s198 + $0x80] sm:$0xff]
                %217 = vst [vmem:[%s199 + $0x40] sm:$0xff] %v216
                %v218 = vld [vmem:[%s198 + $0x88] sm:$0xff]
                %219 = vst [vmem:[%s199 + $0x48] sm:$0xff] %v218
                %v220 = vld [vmem:[%s198 + $0xa0] sm:$0xff]
                %221 = vst [vmem:[%s199 + $0x50] sm:$0xff] %v220
                %v222 = vld [vmem:[%s198 + $0xa8] sm:$0xff]
                %223 = vst [vmem:[%s199 + $0x58] sm:$0xff] %v222
                %v224 = vld [vmem:[%s198 + $0xc0] sm:$0xff]
                %225 = vst [vmem:[%s199 + $0x60] sm:$0xff] %v224
                %v226 = vld [vmem:[%s198 + $0xc8] sm:$0xff]
                %227 = vst [vmem:[%s199 + $0x68] sm:$0xff] %v226
                %v228 = vld [vmem:[%s198 + $0xe0] sm:$0xff]
                %229 = vst [vmem:[%s199 + $0x70] sm:$0xff] %v228
                %v230 = vld [vmem:[%s198 + $0xe8] sm:$0xff]
                %231 = vst [vmem:[%s199 + $0x78] sm:$0xff] %v230
                %v232 = vld [vmem:[%s198 + $0x100] sm:$0xff]
                %233 = vst [vmem:[%s199 + $0x80] sm:$0xff] %v232
                %v234 = vld [vmem:[%s198 + $0x108] sm:$0xff]
                %235 = vst [vmem:[%s199 + $0x88] sm:$0xff] %v234
                %v236 = vld [vmem:[%s198 + $0x120] sm:$0xff]
                %237 = vst [vmem:[%s199 + $0x90] sm:$0xff] %v236
                %v238 = vld [vmem:[%s198 + $0x128] sm:$0xff]
                %239 = vst [vmem:[%s199 + $0x98] sm:$0xff] %v238
                %v240 = vld [vmem:[%s198 + $0x140] sm:$0xff]
                %241 = vst [vmem:[%s199 + $0xa0] sm:$0xff] %v240
                %v242 = vld [vmem:[%s198 + $0x148] sm:$0xff]
                %243 = vst [vmem:[%s199 + $0xa8] sm:$0xff] %v242
                %v244 = vld [vmem:[%s198 + $0x160] sm:$0xff]
                %245 = vst [vmem:[%s199 + $0xb0] sm:$0xff] %v244
                %v246 = vld [vmem:[%s198 + $0x168] sm:$0xff]
                %247 = vst [vmem:[%s199 + $0xb8] sm:$0xff] %v246
                %v248 = vld [vmem:[%s198 + $0x180] sm:$0xff]
                %249 = vst [vmem:[%s199 + $0xc0] sm:$0xff] %v248
                %v250 = vld [vmem:[%s198 + $0x188] sm:$0xff]
                %251 = vst [vmem:[%s199 + $0xc8] sm:$0xff] %v250
                %v252 = vld [vmem:[%s198 + $0x1a0] sm:$0xff]
                %253 = vst [vmem:[%s199 + $0xd0] sm:$0xff] %v252
                %v254 = vld [vmem:[%s198 + $0x1a8] sm:$0xff]
                %255 = vst [vmem:[%s199 + $0xd8] sm:$0xff] %v254
                %v256 = vld [vmem:[%s198 + $0x1c0] sm:$0xff]
                %257 = vst [vmem:[%s199 + $0xe0] sm:$0xff] %v256
                %v258 = vld [vmem:[%s198 + $0x1c8] sm:$0xff]
                %259 = vst [vmem:[%s199 + $0xe8] sm:$0xff] %v258
                %v260 = vld [vmem:[%s198 + $0x1e0] sm:$0xff]
                %261 = vst [vmem:[%s199 + $0xf0] sm:$0xff] %v260
                %v262 = vld [vmem:[%s198 + $0x1e8] sm:$0xff]
                %263 = vst [vmem:[%s199 + $0xf8] sm:$0xff] %v262
                %v264 = vld [vmem:[%s198 + $0x200] sm:$0xff]
                %265 = vst [vmem:[%s199 + $0x100] sm:$0xff] %v264
                %v266 = vld [vmem:[%s198 + $0x208] sm:$0xff]
                %267 = vst [vmem:[%s199 + $0x108] sm:$0xff] %v266
                %v268 = vld [vmem:[%s198 + $0x220] sm:$0xff]
                %269 = vst [vmem:[%s199 + $0x110] sm:$0xff] %v268
                %v270 = vld [vmem:[%s198 + $0x228] sm:$0xff]
                %271 = vst [vmem:[%s199 + $0x118] sm:$0xff] %v270
                %v272 = vld [vmem:[%s198 + $0x240] sm:$0xff]
                %273 = vst [vmem:[%s199 + $0x120] sm:$0xff] %v272
                %v274 = vld [vmem:[%s198 + $0x248] sm:$0xff]
                %275 = vst [vmem:[%s199 + $0x128] sm:$0xff] %v274
                %v276 = vld [vmem:[%s198 + $0x260] sm:$0xff]
                %277 = vst [vmem:[%s199 + $0x130] sm:$0xff] %v276
                %v278 = vld [vmem:[%s198 + $0x268] sm:$0xff]
                %279 = vst [vmem:[%s199 + $0x138] sm:$0xff] %v278
                %v280 = vld [vmem:[%s198 + $0x280] sm:$0xff]
                %281 = vst [vmem:[%s199 + $0x140] sm:$0xff] %v280
                %v282 = vld [vmem:[%s198 + $0x288] sm:$0xff]
                %283 = vst [vmem:[%s199 + $0x148] sm:$0xff] %v282
                %v284 = vld [vmem:[%s198 + $0x2a0] sm:$0xff]
                %285 = vst [vmem:[%s199 + $0x150] sm:$0xff] %v284
                %v286 = vld [vmem:[%s198 + $0x2a8] sm:$0xff]
                %287 = vst [vmem:[%s199 + $0x158] sm:$0xff] %v286
                %v288 = vld [vmem:[%s198 + $0x2c0] sm:$0xff]
                %289 = vst [vmem:[%s199 + $0x160] sm:$0xff] %v288
                %v290 = vld [vmem:[%s198 + $0x2c8] sm:$0xff]
                %291 = vst [vmem:[%s199 + $0x168] sm:$0xff] %v290
                %v292 = vld [vmem:[%s198 + $0x2e0] sm:$0xff]
                %293 = vst [vmem:[%s199 + $0x170] sm:$0xff] %v292
                %v294 = vld [vmem:[%s198 + $0x2e8] sm:$0xff]
                %295 = vst [vmem:[%s199 + $0x178] sm:$0xff] %v294
                %v296 = vld [vmem:[%s198 + $0x300] sm:$0xff]
                %297 = vst [vmem:[%s199 + $0x180] sm:$0xff] %v296
                %v298 = vld [vmem:[%s198 + $0x308] sm:$0xff]
                %299 = vst [vmem:[%s199 + $0x188] sm:$0xff] %v298
                %v300 = vld [vmem:[%s198 + $0x320] sm:$0xff]
                %301 = vst [vmem:[%s199 + $0x190] sm:$0xff] %v300
                %v302 = vld [vmem:[%s198 + $0x328] sm:$0xff]
                %303 = vst [vmem:[%s199 + $0x198] sm:$0xff] %v302
                %v304 = vld [vmem:[%s198 + $0x340] sm:$0xff]
                %305 = vst [vmem:[%s199 + $0x1a0] sm:$0xff] %v304
                %v306 = vld [vmem:[%s198 + $0x348] sm:$0xff]
                %307 = vst [vmem:[%s199 + $0x1a8] sm:$0xff] %v306
                %v308 = vld [vmem:[%s198 + $0x360] sm:$0xff]
                %309 = vst [vmem:[%s199 + $0x1b0] sm:$0xff] %v308
                %v310 = vld [vmem:[%s198 + $0x368] sm:$0xff]
                %311 = vst [vmem:[%s199 + $0x1b8] sm:$0xff] %v310
                %v312 = vld [vmem:[%s198 + $0x380] sm:$0xff]
                %313 = vst [vmem:[%s199 + $0x1c0] sm:$0xff] %v312
                %v314 = vld [vmem:[%s198 + $0x388] sm:$0xff]
                %315 = vst [vmem:[%s199 + $0x1c8] sm:$0xff] %v314
                %v316 = vld [vmem:[%s198 + $0x3a0] sm:$0xff]
                %317 = vst [vmem:[%s199 + $0x1d0] sm:$0xff] %v316
                %v318 = vld [vmem:[%s198 + $0x3a8] sm:$0xff]
                %319 = vst [vmem:[%s199 + $0x1d8] sm:$0xff] %v318
                %v320 = vld [vmem:[%s198 + $0x3c0] sm:$0xff]
                %321 = vst [vmem:[%s199 + $0x1e0] sm:$0xff] %v320
                %v322 = vld [vmem:[%s198 + $0x3c8] sm:$0xff]
                %323 = vst [vmem:[%s199 + $0x1e8] sm:$0xff] %v322
                %v324 = vld [vmem:[%s198 + $0x3e0] sm:$0xff]
                %325 = vst [vmem:[%s199 + $0x1f0] sm:$0xff] %v324
                %v326 = vld [vmem:[%s198 + $0x3e8] sm:$0xff]
                %327 = vst [vmem:[%s199 + $0x1f8] sm:$0xff] %v326
                %v328 = vld [vmem:[%s198 + $0x400] sm:$0xff]
                %329 = vst [vmem:[%s199 + $0x200] sm:$0xff] %v328
                %v330 = vld [vmem:[%s198 + $0x408] sm:$0xff]
                %331 = vst [vmem:[%s199 + $0x208] sm:$0xff] %v330
                %v332 = vld [vmem:[%s198 + $0x420] sm:$0xff]
                %333 = vst [vmem:[%s199 + $0x210] sm:$0xff] %v332
                %v334 = vld [vmem:[%s198 + $0x428] sm:$0xff]
                %335 = vst [vmem:[%s199 + $0x218] sm:$0xff] %v334
                %v336 = vld [vmem:[%s198 + $0x440] sm:$0xff]
                %337 = vst [vmem:[%s199 + $0x220] sm:$0xff] %v336
                %v338 = vld [vmem:[%s198 + $0x448] sm:$0xff]
                %339 = vst [vmem:[%s199 + $0x228] sm:$0xff] %v338
                %v340 = vld [vmem:[%s198 + $0x460] sm:$0xff]
                %341 = vst [vmem:[%s199 + $0x230] sm:$0xff] %v340
                %v342 = vld [vmem:[%s198 + $0x468] sm:$0xff]
                %343 = vst [vmem:[%s199 + $0x238] sm:$0xff] %v342
                %v344 = vld [vmem:[%s198 + $0x480] sm:$0xff]
                %345 = vst [vmem:[%s199 + $0x240] sm:$0xff] %v344
                %v346 = vld [vmem:[%s198 + $0x488] sm:$0xff]
                %347 = vst [vmem:[%s199 + $0x248] sm:$0xff] %v346
                %v348 = vld [vmem:[%s198 + $0x4a0] sm:$0xff]
                %349 = vst [vmem:[%s199 + $0x250] sm:$0xff] %v348
                %v350 = vld [vmem:[%s198 + $0x4a8] sm:$0xff]
                %351 = vst [vmem:[%s199 + $0x258] sm:$0xff] %v350
                %v352 = vld [vmem:[%s198 + $0x4c0] sm:$0xff]
                %353 = vst [vmem:[%s199 + $0x260] sm:$0xff] %v352
                %v354 = vld [vmem:[%s198 + $0x4c8] sm:$0xff]
                %355 = vst [vmem:[%s199 + $0x268] sm:$0xff] %v354
                %v356 = vld [vmem:[%s198 + $0x4e0] sm:$0xff]
                %357 = vst [vmem:[%s199 + $0x270] sm:$0xff] %v356
                %v358 = vld [vmem:[%s198 + $0x4e8] sm:$0xff]
                %359 = vst [vmem:[%s199 + $0x278] sm:$0xff] %v358
                %v360 = vld [vmem:[%s198 + $0x500] sm:$0xff]
                %361 = vst [vmem:[%s199 + $0x280] sm:$0xff] %v360
                %v362 = vld [vmem:[%s198 + $0x508] sm:$0xff]
                %363 = vst [vmem:[%s199 + $0x288] sm:$0xff] %v362
                %v364 = vld [vmem:[%s198 + $0x520] sm:$0xff]
                %365 = vst [vmem:[%s199 + $0x290] sm:$0xff] %v364
                %v366 = vld [vmem:[%s198 + $0x528] sm:$0xff]
                %367 = vst [vmem:[%s199 + $0x298] sm:$0xff] %v366
                %v368 = vld [vmem:[%s198 + $0x540] sm:$0xff]
                %369 = vst [vmem:[%s199 + $0x2a0] sm:$0xff] %v368
                %v370 = vld [vmem:[%s198 + $0x548] sm:$0xff]
                %371 = vst [vmem:[%s199 + $0x2a8] sm:$0xff] %v370
                %v372 = vld [vmem:[%s198 + $0x560] sm:$0xff]
                %373 = vst [vmem:[%s199 + $0x2b0] sm:$0xff] %v372
                %v374 = vld [vmem:[%s198 + $0x568] sm:$0xff]
                %375 = vst [vmem:[%s199 + $0x2b8] sm:$0xff] %v374
                %v376 = vld [vmem:[%s198 + $0x580] sm:$0xff]
                %377 = vst [vmem:[%s199 + $0x2c0] sm:$0xff] %v376
                %v378 = vld [vmem:[%s198 + $0x588] sm:$0xff]
                %379 = vst [vmem:[%s199 + $0x2c8] sm:$0xff] %v378
                %v380 = vld [vmem:[%s198 + $0x5a0] sm:$0xff]
                %381 = vst [vmem:[%s199 + $0x2d0] sm:$0xff] %v380
                %v382 = vld [vmem:[%s198 + $0x5a8] sm:$0xff]
                %383 = vst [vmem:[%s199 + $0x2d8] sm:$0xff] %v382
                %v384 = vld [vmem:[%s198 + $0x5c0] sm:$0xff]
                %385 = vst [vmem:[%s199 + $0x2e0] sm:$0xff] %v384
                %v386 = vld [vmem:[%s198 + $0x5c8] sm:$0xff]
                %387 = vst [vmem:[%s199 + $0x2e8] sm:$0xff] %v386
                %v388 = vld [vmem:[%s198 + $0x5e0] sm:$0xff]
                %389 = vst [vmem:[%s199 + $0x2f0] sm:$0xff] %v388
                %v390 = vld [vmem:[%s198 + $0x5e8] sm:$0xff]
                %391 = vst [vmem:[%s199 + $0x2f8] sm:$0xff] %v390
                %v392 = vld [vmem:[%s198 + $0x600] sm:$0xff]
                %393 = vst [vmem:[%s199 + $0x300] sm:$0xff] %v392
                %v394 = vld [vmem:[%s198 + $0x608] sm:$0xff]
                %395 = vst [vmem:[%s199 + $0x308] sm:$0xff] %v394
                %v396 = vld [vmem:[%s198 + $0x620] sm:$0xff]
                %397 = vst [vmem:[%s199 + $0x310] sm:$0xff] %v396
                %v398 = vld [vmem:[%s198 + $0x628] sm:$0xff]
                %399 = vst [vmem:[%s199 + $0x318] sm:$0xff] %v398
                %v400 = vld [vmem:[%s198 + $0x640] sm:$0xff]
                %401 = vst [vmem:[%s199 + $0x320] sm:$0xff] %v400
                %v402 = vld [vmem:[%s198 + $0x648] sm:$0xff]
                %403 = vst [vmem:[%s199 + $0x328] sm:$0xff] %v402
                %v404 = vld [vmem:[%s198 + $0x660] sm:$0xff]
                %405 = vst [vmem:[%s199 + $0x330] sm:$0xff] %v404
                %v406 = vld [vmem:[%s198 + $0x668] sm:$0xff]
                %407 = vst [vmem:[%s199 + $0x338] sm:$0xff] %v406
                %v408 = vld [vmem:[%s198 + $0x680] sm:$0xff]
                %409 = vst [vmem:[%s199 + $0x340] sm:$0xff] %v408
                %v410 = vld [vmem:[%s198 + $0x688] sm:$0xff]
                %411 = vst [vmem:[%s199 + $0x348] sm:$0xff] %v410
                %v412 = vld [vmem:[%s198 + $0x6a0] sm:$0xff]
                %413 = vst [vmem:[%s199 + $0x350] sm:$0xff] %v412
                %v414 = vld [vmem:[%s198 + $0x6a8] sm:$0xff]
                %415 = vst [vmem:[%s199 + $0x358] sm:$0xff] %v414
                %v416 = vld [vmem:[%s198 + $0x6c0] sm:$0xff]
                %417 = vst [vmem:[%s199 + $0x360] sm:$0xff] %v416
                %v418 = vld [vmem:[%s198 + $0x6c8] sm:$0xff]
                %419 = vst [vmem:[%s199 + $0x368] sm:$0xff] %v418
                %v420 = vld [vmem:[%s198 + $0x6e0] sm:$0xff]
                %421 = vst [vmem:[%s199 + $0x370] sm:$0xff] %v420
                %v422 = vld [vmem:[%s198 + $0x6e8] sm:$0xff]
                %423 = vst [vmem:[%s199 + $0x378] sm:$0xff] %v422
                %v424 = vld [vmem:[%s198 + $0x700] sm:$0xff]
                %425 = vst [vmem:[%s199 + $0x380] sm:$0xff] %v424
                %v426 = vld [vmem:[%s198 + $0x708] sm:$0xff]
                %427 = vst [vmem:[%s199 + $0x388] sm:$0xff] %v426
                %v428 = vld [vmem:[%s198 + $0x720] sm:$0xff]
                %429 = vst [vmem:[%s199 + $0x390] sm:$0xff] %v428
                %v430 = vld [vmem:[%s198 + $0x728] sm:$0xff]
                %431 = vst [vmem:[%s199 + $0x398] sm:$0xff] %v430
                %v432 = vld [vmem:[%s198 + $0x740] sm:$0xff]
                %433 = vst [vmem:[%s199 + $0x3a0] sm:$0xff] %v432
                %v434 = vld [vmem:[%s198 + $0x748] sm:$0xff]
                %435 = vst [vmem:[%s199 + $0x3a8] sm:$0xff] %v434
                %v436 = vld [vmem:[%s198 + $0x760] sm:$0xff]
                %437 = vst [vmem:[%s199 + $0x3b0] sm:$0xff] %v436
                %v438 = vld [vmem:[%s198 + $0x768] sm:$0xff]
                %439 = vst [vmem:[%s199 + $0x3b8] sm:$0xff] %v438
                %v440 = vld [vmem:[%s198 + $0x780] sm:$0xff]
                %441 = vst [vmem:[%s199 + $0x3c0] sm:$0xff] %v440
                %v442 = vld [vmem:[%s198 + $0x788] sm:$0xff]
                %443 = vst [vmem:[%s199 + $0x3c8] sm:$0xff] %v442
                %v444 = vld [vmem:[%s198 + $0x7a0] sm:$0xff]
                %445 = vst [vmem:[%s199 + $0x3d0] sm:$0xff] %v444
                %v446 = vld [vmem:[%s198 + $0x7a8] sm:$0xff]
                %447 = vst [vmem:[%s199 + $0x3d8] sm:$0xff] %v446
                %v448 = vld [vmem:[%s198 + $0x7c0] sm:$0xff]
                %449 = vst [vmem:[%s199 + $0x3e0] sm:$0xff] %v448
                %v450 = vld [vmem:[%s198 + $0x7c8] sm:$0xff]
                %451 = vst [vmem:[%s199 + $0x3e8] sm:$0xff] %v450
                %v452 = vld [vmem:[%s198 + $0x7e0] sm:$0xff]
                %453 = vst [vmem:[%s199 + $0x3f0] sm:$0xff] %v452
                %v454 = vld [vmem:[%s198 + $0x7e8] sm:$0xff]
                %455 = vst [vmem:[%s199 + $0x3f8] sm:$0xff] %v454
                %v456 = vld [vmem:[%s198 + $0x800] sm:$0xff]
                %457 = vst [vmem:[%s199 + $0x400] sm:$0xff] %v456
                %v458 = vld [vmem:[%s198 + $0x808] sm:$0xff]
                %459 = vst [vmem:[%s199 + $0x408] sm:$0xff] %v458
                %v460 = vld [vmem:[%s198 + $0x820] sm:$0xff]
                %461 = vst [vmem:[%s199 + $0x410] sm:$0xff] %v460
                %v462 = vld [vmem:[%s198 + $0x828] sm:$0xff]
                %463 = vst [vmem:[%s199 + $0x418] sm:$0xff] %v462
                %v464 = vld [vmem:[%s198 + $0x840] sm:$0xff]
                %465 = vst [vmem:[%s199 + $0x420] sm:$0xff] %v464
                %v466 = vld [vmem:[%s198 + $0x848] sm:$0xff]
                %467 = vst [vmem:[%s199 + $0x428] sm:$0xff] %v466
                %v468 = vld [vmem:[%s198 + $0x860] sm:$0xff]
                %469 = vst [vmem:[%s199 + $0x430] sm:$0xff] %v468
                %v470 = vld [vmem:[%s198 + $0x868] sm:$0xff]
                %471 = vst [vmem:[%s199 + $0x438] sm:$0xff] %v470
                %v472 = vld [vmem:[%s198 + $0x880] sm:$0xff]
                %473 = vst [vmem:[%s199 + $0x440] sm:$0xff] %v472
                %v474 = vld [vmem:[%s198 + $0x888] sm:$0xff]
                %475 = vst [vmem:[%s199 + $0x448] sm:$0xff] %v474
                %v476 = vld [vmem:[%s198 + $0x8a0] sm:$0xff]
                %477 = vst [vmem:[%s199 + $0x450] sm:$0xff] %v476
                %v478 = vld [vmem:[%s198 + $0x8a8] sm:$0xff]
                %479 = vst [vmem:[%s199 + $0x458] sm:$0xff] %v478
                %v480 = vld [vmem:[%s198 + $0x8c0] sm:$0xff]
                %481 = vst [vmem:[%s199 + $0x460] sm:$0xff] %v480
                %v482 = vld [vmem:[%s198 + $0x8c8] sm:$0xff]
                %483 = vst [vmem:[%s199 + $0x468] sm:$0xff] %v482
                %v484 = vld [vmem:[%s198 + $0x8e0] sm:$0xff]
                %485 = vst [vmem:[%s199 + $0x470] sm:$0xff] %v484
                %v486 = vld [vmem:[%s198 + $0x8e8] sm:$0xff]
                %487 = vst [vmem:[%s199 + $0x478] sm:$0xff] %v486
                %v488 = vld [vmem:[%s198 + $0x900] sm:$0xff]
                %489 = vst [vmem:[%s199 + $0x480] sm:$0xff] %v488
                %v490 = vld [vmem:[%s198 + $0x908] sm:$0xff]
                %491 = vst [vmem:[%s199 + $0x488] sm:$0xff] %v490
                %v492 = vld [vmem:[%s198 + $0x920] sm:$0xff]
                %493 = vst [vmem:[%s199 + $0x490] sm:$0xff] %v492
                %v494 = vld [vmem:[%s198 + $0x928] sm:$0xff]
                %495 = vst [vmem:[%s199 + $0x498] sm:$0xff] %v494
                %v496 = vld [vmem:[%s198 + $0x940] sm:$0xff]
                %497 = vst [vmem:[%s199 + $0x4a0] sm:$0xff] %v496
                %v498 = vld [vmem:[%s198 + $0x948] sm:$0xff]
                %499 = vst [vmem:[%s199 + $0x4a8] sm:$0xff] %v498
                %v500 = vld [vmem:[%s198 + $0x960] sm:$0xff]
                %501 = vst [vmem:[%s199 + $0x4b0] sm:$0xff] %v500
                %v502 = vld [vmem:[%s198 + $0x968] sm:$0xff]
                %503 = vst [vmem:[%s199 + $0x4b8] sm:$0xff] %v502
                %v504 = vld [vmem:[%s198 + $0x980] sm:$0xff]
                %505 = vst [vmem:[%s199 + $0x4c0] sm:$0xff] %v504
                %v506 = vld [vmem:[%s198 + $0x988] sm:$0xff]
                %507 = vst [vmem:[%s199 + $0x4c8] sm:$0xff] %v506
                %v508 = vld [vmem:[%s198 + $0x9a0] sm:$0xff]
                %509 = vst [vmem:[%s199 + $0x4d0] sm:$0xff] %v508
                %v510 = vld [vmem:[%s198 + $0x9a8] sm:$0xff]
                %511 = vst [vmem:[%s199 + $0x4d8] sm:$0xff] %v510
                %v512 = vld [vmem:[%s198 + $0x9c0] sm:$0xff]
                %513 = vst [vmem:[%s199 + $0x4e0] sm:$0xff] %v512
                %v514 = vld [vmem:[%s198 + $0x9c8] sm:$0xff]
                %515 = vst [vmem:[%s199 + $0x4e8] sm:$0xff] %v514
                %v516 = vld [vmem:[%s198 + $0x9e0] sm:$0xff]
                %517 = vst [vmem:[%s199 + $0x4f0] sm:$0xff] %v516
                %v518 = vld [vmem:[%s198 + $0x9e8] sm:$0xff]
                %519 = vst [vmem:[%s199 + $0x4f8] sm:$0xff] %v518
                %v520 = vld [vmem:[%s198 + $0xa00] sm:$0xff]
                %521 = vst [vmem:[%s199 + $0x500] sm:$0xff] %v520
                %v522 = vld [vmem:[%s198 + $0xa08] sm:$0xff]
                %523 = vst [vmem:[%s199 + $0x508] sm:$0xff] %v522
                %v524 = vld [vmem:[%s198 + $0xa20] sm:$0xff]
                %525 = vst [vmem:[%s199 + $0x510] sm:$0xff] %v524
                %v526 = vld [vmem:[%s198 + $0xa28] sm:$0xff]
                %527 = vst [vmem:[%s199 + $0x518] sm:$0xff] %v526
                %v528 = vld [vmem:[%s198 + $0xa40] sm:$0xff]
                %529 = vst [vmem:[%s199 + $0x520] sm:$0xff] %v528
                %v530 = vld [vmem:[%s198 + $0xa48] sm:$0xff]
                %531 = vst [vmem:[%s199 + $0x528] sm:$0xff] %v530
                %v532 = vld [vmem:[%s198 + $0xa60] sm:$0xff]
                %533 = vst [vmem:[%s199 + $0x530] sm:$0xff] %v532
                %v534 = vld [vmem:[%s198 + $0xa68] sm:$0xff]
                %535 = vst [vmem:[%s199 + $0x538] sm:$0xff] %v534
                %v536 = vld [vmem:[%s198 + $0xa80] sm:$0xff]
                %537 = vst [vmem:[%s199 + $0x540] sm:$0xff] %v536
                %v538 = vld [vmem:[%s198 + $0xa88] sm:$0xff]
                %539 = vst [vmem:[%s199 + $0x548] sm:$0xff] %v538
                %v540 = vld [vmem:[%s198 + $0xaa0] sm:$0xff]
                %541 = vst [vmem:[%s199 + $0x550] sm:$0xff] %v540
                %v542 = vld [vmem:[%s198 + $0xaa8] sm:$0xff]
                %543 = vst [vmem:[%s199 + $0x558] sm:$0xff] %v542
                %v544 = vld [vmem:[%s198 + $0xac0] sm:$0xff]
                %545 = vst [vmem:[%s199 + $0x560] sm:$0xff] %v544
                %v546 = vld [vmem:[%s198 + $0xac8] sm:$0xff]
                %547 = vst [vmem:[%s199 + $0x568] sm:$0xff] %v546
                %v548 = vld [vmem:[%s198 + $0xae0] sm:$0xff]
                %549 = vst [vmem:[%s199 + $0x570] sm:$0xff] %v548
                %v550 = vld [vmem:[%s198 + $0xae8] sm:$0xff]
                %551 = vst [vmem:[%s199 + $0x578] sm:$0xff] %v550
                %v552 = vld [vmem:[%s198 + $0xb00] sm:$0xff]
                %553 = vst [vmem:[%s199 + $0x580] sm:$0xff] %v552
                %v554 = vld [vmem:[%s198 + $0xb08] sm:$0xff]
                %555 = vst [vmem:[%s199 + $0x588] sm:$0xff] %v554
                %v556 = vld [vmem:[%s198 + $0xb20] sm:$0xff]
                %557 = vst [vmem:[%s199 + $0x590] sm:$0xff] %v556
                %v558 = vld [vmem:[%s198 + $0xb28] sm:$0xff]
                %559 = vst [vmem:[%s199 + $0x598] sm:$0xff] %v558
                %v560 = vld [vmem:[%s198 + $0xb40] sm:$0xff]
                %561 = vst [vmem:[%s199 + $0x5a0] sm:$0xff] %v560
                %v562 = vld [vmem:[%s198 + $0xb48] sm:$0xff]
                %563 = vst [vmem:[%s199 + $0x5a8] sm:$0xff] %v562
                %v564 = vld [vmem:[%s198 + $0xb60] sm:$0xff]
                %565 = vst [vmem:[%s199 + $0x5b0] sm:$0xff] %v564
                %v566 = vld [vmem:[%s198 + $0xb68] sm:$0xff]
                %567 = vst [vmem:[%s199 + $0x5b8] sm:$0xff] %v566
                %v568 = vld [vmem:[%s198 + $0xb80] sm:$0xff]
                %569 = vst [vmem:[%s199 + $0x5c0] sm:$0xff] %v568
                %v570 = vld [vmem:[%s198 + $0xb88] sm:$0xff]
                %571 = vst [vmem:[%s199 + $0x5c8] sm:$0xff] %v570
                %v572 = vld [vmem:[%s198 + $0xba0] sm:$0xff]
                %573 = vst [vmem:[%s199 + $0x5d0] sm:$0xff] %v572
                %v574 = vld [vmem:[%s198 + $0xba8] sm:$0xff]
                %575 = vst [vmem:[%s199 + $0x5d8] sm:$0xff] %v574
                %v576 = vld [vmem:[%s198 + $0xbc0] sm:$0xff]
                %577 = vst [vmem:[%s199 + $0x5e0] sm:$0xff] %v576
                %v578 = vld [vmem:[%s198 + $0xbc8] sm:$0xff]
                %579 = vst [vmem:[%s199 + $0x5e8] sm:$0xff] %v578
                %v580 = vld [vmem:[%s198 + $0xbe0] sm:$0xff]
                %581 = vst [vmem:[%s199 + $0x5f0] sm:$0xff] %v580
                %v582 = vld [vmem:[%s198 + $0xbe8] sm:$0xff]
                %583 = vst [vmem:[%s199 + $0x5f8] sm:$0xff] %v582
                %v584 = vld [vmem:[%s198 + $0xc00] sm:$0xff]
                %585 = vst [vmem:[%s199 + $0x600] sm:$0xff] %v584
                %v586 = vld [vmem:[%s198 + $0xc08] sm:$0xff]
                %587 = vst [vmem:[%s199 + $0x608] sm:$0xff] %v586
                %v588 = vld [vmem:[%s198 + $0xc20] sm:$0xff]
                %589 = vst [vmem:[%s199 + $0x610] sm:$0xff] %v588
                %v590 = vld [vmem:[%s198 + $0xc28] sm:$0xff]
                %591 = vst [vmem:[%s199 + $0x618] sm:$0xff] %v590
                %v592 = vld [vmem:[%s198 + $0xc40] sm:$0xff]
                %593 = vst [vmem:[%s199 + $0x620] sm:$0xff] %v592
                %v594 = vld [vmem:[%s198 + $0xc48] sm:$0xff]
                %595 = vst [vmem:[%s199 + $0x628] sm:$0xff] %v594
                %v596 = vld [vmem:[%s198 + $0xc60] sm:$0xff]
                %597 = vst [vmem:[%s199 + $0x630] sm:$0xff] %v596
                %v598 = vld [vmem:[%s198 + $0xc68] sm:$0xff]
                %599 = vst [vmem:[%s199 + $0x638] sm:$0xff] %v598
                %v600 = vld [vmem:[%s198 + $0xc80] sm:$0xff]
                %601 = vst [vmem:[%s199 + $0x640] sm:$0xff] %v600
                %v602 = vld [vmem:[%s198 + $0xc88] sm:$0xff]
                %603 = vst [vmem:[%s199 + $0x648] sm:$0xff] %v602
                %v604 = vld [vmem:[%s198 + $0xca0] sm:$0xff]
                %605 = vst [vmem:[%s199 + $0x650] sm:$0xff] %v604
                %v606 = vld [vmem:[%s198 + $0xca8] sm:$0xff]
                %607 = vst [vmem:[%s199 + $0x658] sm:$0xff] %v606
                %v608 = vld [vmem:[%s198 + $0xcc0] sm:$0xff]
                %609 = vst [vmem:[%s199 + $0x660] sm:$0xff] %v608
                %v610 = vld [vmem:[%s198 + $0xcc8] sm:$0xff]
                %611 = vst [vmem:[%s199 + $0x668] sm:$0xff] %v610
                %v612 = vld [vmem:[%s198 + $0xce0] sm:$0xff]
                %613 = vst [vmem:[%s199 + $0x670] sm:$0xff] %v612
                %v614 = vld [vmem:[%s198 + $0xce8] sm:$0xff]
                %615 = vst [vmem:[%s199 + $0x678] sm:$0xff] %v614
                %v616 = vld [vmem:[%s198 + $0xd00] sm:$0xff]
                %617 = vst [vmem:[%s199 + $0x680] sm:$0xff] %v616
                %v618 = vld [vmem:[%s198 + $0xd08] sm:$0xff]
                %619 = vst [vmem:[%s199 + $0x688] sm:$0xff] %v618
                %v620 = vld [vmem:[%s198 + $0xd20] sm:$0xff]
                %621 = vst [vmem:[%s199 + $0x690] sm:$0xff] %v620
                %v622 = vld [vmem:[%s198 + $0xd28] sm:$0xff]
                %623 = vst [vmem:[%s199 + $0x698] sm:$0xff] %v622
                %v624 = vld [vmem:[%s198 + $0xd40] sm:$0xff]
                %625 = vst [vmem:[%s199 + $0x6a0] sm:$0xff] %v624
                %v626 = vld [vmem:[%s198 + $0xd48] sm:$0xff]
                %627 = vst [vmem:[%s199 + $0x6a8] sm:$0xff] %v626
                %v628 = vld [vmem:[%s198 + $0xd60] sm:$0xff]
                %629 = vst [vmem:[%s199 + $0x6b0] sm:$0xff] %v628
                %v630 = vld [vmem:[%s198 + $0xd68] sm:$0xff]
                %631 = vst [vmem:[%s199 + $0x6b8] sm:$0xff] %v630
              $region49: #{sparse_kernel3d_forward.1} parent=43 // loop_footer
                %s197 = sadd.s32 1, %s193
              $region50: #{sparse_kernel3d_forward.1} parent=43 // loop_footer_branch
                %192 = sbr.rel target = $region46
              $region51: #{sparse_kernel3d_forward.1} parent=43 // loop_exit
                _
            $region44: #{sparse_kernel3d_forward.1} parent=39 // pred_fallthru
              _
            // Predicated region
            $region52: #{sparse_kernel3d_forward.1} parent=39 // pred_check
              _
            $region53: #{sparse_kernel3d_forward.1} parent=39 // pred_check_branch
              %633 = sbr.rel target = $region55
            $region54: #{sparse_kernel3d_forward.1} parent=39 // pred_region
              _
            $region55: #{sparse_kernel3d_forward.1} parent=39 // pred_fallthru
              _
          $region40: #{sparse_kernel3d_forward.1} parent=35 // pred_fallthru
            _
          %634 = vnop
        $region36: #{sparse_kernel3d_forward.1} parent=31 // pred_fallthru
          _
      $region32: #{sparse_kernel3d_forward.1} parent=5 // pred_fallthru
        _
      %p635 = scmp.le.s32.totalorder 1, %s11
      %p636 = scmp.lt.s32.totalorder %s11, 3
      %p637 = pnand %p635, %p636
      %p638 = pneg %p637
      // Predicated region
      $region56: #{sparse_kernel3d_forward.1} parent=5 // pred_check
        _
      $region57: #{sparse_kernel3d_forward.1} parent=5 // pred_check_branch
        %640 = sbr.rel (%p637) target = $region59
      $region58: #{sparse_kernel3d_forward.1} parent=5 // pred_region
        %s641 = ssub.s32 %s11, 1
        %s642 = sand.u32 %s24, 1
        %s643 = sand.u32 %s24, 1
        %s644 = smul.addr %s643, 1728
        %s645 = scalar_lea.vmem [#allocation2], %s644
        // Predicated region
        $region60: #{sparse_kernel3d_forward.1} parent=58 // pred_check
          %p646 = pneg %p37
        $region61: #{sparse_kernel3d_forward.1} parent=58 // pred_check_branch
          %648 = sbr.rel (%p646) target = $region63
        $region62: #{sparse_kernel3d_forward.1} parent=58 // pred_region
          _
        $region63: #{sparse_kernel3d_forward.1} parent=58 // pred_fallthru
          _
        %s649 = sand.u32 %s24, 1
        %s650 = sand.u32 %s24, 1
        %s651 = smul.addr %s650, 1728
        %s652 = scalar_lea.vmem [#allocation2], %s651
        %p653 = pneg %p37
        %p654 = pneg %p34
        %p655 = pneg %p58
        %p656 = pneg %p55
        %p657 = pneg %p79
        %p658 = pneg %p76
        %p659 = pneg %p100
        %p660 = pneg %p97
        %p661 = pneg %p121
        %p662 = pneg %p118
        %p663 = pneg %p147
        %p664 = pneg %p144
        %s665 = sand.u32 %s134, 1
        %s666 = sand.u32 %s134, 1
        %s667 = smul.addr %s666, 128
        %s668 = scalar_lea.vmem [#allocation3], %s667
        %s669 = smul.u32 4, %s16
        %s670 = smul.u32 4, %s16
        %v672 = vld [vmem:[%s1] sm:$0xff]
        %v673 = vld [vmem:[%s1 + $0x8] sm:$0xff]
        %v674 = vld [vmem:[%s1 + $0x10] sm:$0xff]
        %v675 = vld [vmem:[%s1 + $0x18] sm:$0xf]
        %v676 = vld [vmem:[%s1 + $0x1c] sm:$0xff]
        %v677 = vld [vmem:[%s1 + $0x24] sm:$0xff]
        %v678 = vld [vmem:[%s1 + $0x2c] sm:$0xff]
        %v679 = vld [vmem:[%s1 + $0x34] sm:$0xf]
        %v680 = vld [vmem:[%s1 + $0x38] sm:$0xff]
        %v681 = vld [vmem:[%s1 + $0x40] sm:$0xff]
        %v682 = vld [vmem:[%s1 + $0x48] sm:$0xff]
        %v683 = vld [vmem:[%s1 + $0x50] sm:$0xf]
        %v684 = vld [vmem:[%s1 + $0x54] sm:$0xff]
        %v685 = vld [vmem:[%s1 + $0x5c] sm:$0xff]
        %v686 = vld [vmem:[%s1 + $0x64] sm:$0xff]
        %v687 = vld [vmem:[%s1 + $0x6c] sm:$0xf]
        %v688 = vld [vmem:[%s645] sm:$0xff]
        %v689 = vld [vmem:[%s645 + $0x8] sm:$0xff]
        %v690 = vld [vmem:[%s645 + $0x10] sm:$0xff]
        %v691 = vld [vmem:[%s645 + $0x18] sm:$0xff]
        %v692 = vld [vmem:[%s645 + $0x20] sm:$0xff]
        %v693 = vld [vmem:[%s645 + $0x28] sm:$0xff]
        %v694 = vld [vmem:[%s645 + $0x30] sm:$0xff]
        %v695 = vld [vmem:[%s645 + $0x38] sm:$0xff]
        %v696 = vld [vmem:[%s645 + $0x40] sm:$0xff]
        %v697 = vld [vmem:[%s645 + $0x48] sm:$0xff]
        %v698 = vld [vmem:[%s645 + $0x50] sm:$0xff]
        %v699 = vld [vmem:[%s645 + $0x58] sm:$0xff]
        %v700 = vld [vmem:[%s645 + $0x60] sm:$0xff]
        %v701 = vld [vmem:[%s645 + $0x68] sm:$0xff]
        %v702 = vld [vmem:[%s645 + $0x70] sm:$0xff]
        %v703 = vld [vmem:[%s645 + $0x78] sm:$0xff]
        %v704 = vld [vmem:[%s645 + $0x80] sm:$0xff]
        %v705 = vld [vmem:[%s645 + $0x88] sm:$0xff]
        %v706 = vld [vmem:[%s645 + $0x90] sm:$0xff]
        %v707 = vld [vmem:[%s645 + $0x98] sm:$0xff]
        %v708 = vld [vmem:[%s645 + $0xa0] sm:$0xff]
        %v709 = vld [vmem:[%s645 + $0xa8] sm:$0xff]
        %v710 = vld [vmem:[%s645 + $0xb0] sm:$0xff]
        %v711 = vld [vmem:[%s645 + $0xb8] sm:$0xff]
        %v712 = vld [vmem:[%s645 + $0xc0] sm:$0xff]
        %v713 = vld [vmem:[%s645 + $0xc8] sm:$0xff]
        %v714 = vld [vmem:[%s645 + $0xd0] sm:$0xff]
        %v715 = vld [vmem:[%s645 + $0xd8] sm:$0xff]
        %v716 = vld [vmem:[%s645 + $0xe0] sm:$0xff]
        %v717 = vld [vmem:[%s645 + $0xe8] sm:$0xff]
        %v718 = vld [vmem:[%s645 + $0xf0] sm:$0xff]
        %v719 = vld [vmem:[%s645 + $0xf8] sm:$0xff]
        %v720 = vld [vmem:[%s645 + $0x100] sm:$0xff]
        %v721 = vld [vmem:[%s645 + $0x108] sm:$0xff]
        %v722 = vld [vmem:[%s645 + $0x110] sm:$0xff]
        %v723 = vld [vmem:[%s645 + $0x118] sm:$0xff]
        %v724 = vld [vmem:[%s645 + $0x120] sm:$0xff]
        %v725 = vld [vmem:[%s645 + $0x128] sm:$0xff]
        %v726 = vld [vmem:[%s645 + $0x130] sm:$0xff]
        %v727 = vld [vmem:[%s645 + $0x138] sm:$0xff]
        %v728 = vld [vmem:[%s645 + $0x140] sm:$0xff]
        %v729 = vld [vmem:[%s645 + $0x148] sm:$0xff]
        %v730 = vld [vmem:[%s645 + $0x150] sm:$0xff]
        %v731 = vld [vmem:[%s645 + $0x158] sm:$0xff]
        %v732 = vld [vmem:[%s645 + $0x160] sm:$0xff]
        %v733 = vld [vmem:[%s645 + $0x168] sm:$0xff]
        %v734 = vld [vmem:[%s645 + $0x170] sm:$0xff]
        %v735 = vld [vmem:[%s645 + $0x178] sm:$0xff]
        %v736 = vld [vmem:[%s645 + $0x180] sm:$0xff]
        %v737 = vld [vmem:[%s645 + $0x188] sm:$0xff]
        %v738 = vld [vmem:[%s645 + $0x190] sm:$0xff]
        %v739 = vld [vmem:[%s645 + $0x198] sm:$0xff]
        %v740 = vld [vmem:[%s645 + $0x1a0] sm:$0xff]
        %v741 = vld [vmem:[%s645 + $0x1a8] sm:$0xff]
        %v742 = vld [vmem:[%s645 + $0x1b0] sm:$0xff]
        %v743 = vld [vmem:[%s645 + $0x1b8] sm:$0xff]
        %v744 = vld [vmem:[%s645 + $0x1c0] sm:$0xff]
        %v745 = vld [vmem:[%s645 + $0x1c8] sm:$0xff]
        %v746 = vld [vmem:[%s645 + $0x1d0] sm:$0xff]
        %v747 = vld [vmem:[%s645 + $0x1d8] sm:$0xff]
        %v748 = vld [vmem:[%s645 + $0x1e0] sm:$0xff]
        %v749 = vld [vmem:[%s645 + $0x1e8] sm:$0xff]
        %v750 = vld [vmem:[%s645 + $0x1f0] sm:$0xff]
        %v751 = vld [vmem:[%s645 + $0x1f8] sm:$0xff]
        %v752 = vld [vmem:[%s645 + $0x200] sm:$0xff]
        %v753 = vld [vmem:[%s645 + $0x208] sm:$0xff]
        %v754 = vld [vmem:[%s645 + $0x210] sm:$0xff]
        %v755 = vld [vmem:[%s645 + $0x218] sm:$0xff]
        %v756 = vld [vmem:[%s645 + $0x220] sm:$0xff]
        %v757 = vld [vmem:[%s645 + $0x228] sm:$0xff]
        %v758 = vld [vmem:[%s645 + $0x230] sm:$0xff]
        %v759 = vld [vmem:[%s645 + $0x238] sm:$0xff]
        %v760 = vld [vmem:[%s645 + $0x240] sm:$0xff]
        %v761 = vld [vmem:[%s645 + $0x248] sm:$0xff]
        %v762 = vld [vmem:[%s645 + $0x250] sm:$0xff]
        %v763 = vld [vmem:[%s645 + $0x258] sm:$0xff]
        %v764 = vld [vmem:[%s645 + $0x260] sm:$0xff]
        %v765 = vld [vmem:[%s645 + $0x268] sm:$0xff]
        %v766 = vld [vmem:[%s645 + $0x270] sm:$0xff]
        %v767 = vld [vmem:[%s645 + $0x278] sm:$0xff]
        %v768 = vld [vmem:[%s645 + $0x280] sm:$0xff]
        %v769 = vld [vmem:[%s645 + $0x288] sm:$0xff]
        %v770 = vld [vmem:[%s645 + $0x290] sm:$0xff]
        %v771 = vld [vmem:[%s645 + $0x298] sm:$0xff]
        %v772 = vld [vmem:[%s645 + $0x2a0] sm:$0xff]
        %v773 = vld [vmem:[%s645 + $0x2a8] sm:$0xff]
        %v774 = vld [vmem:[%s645 + $0x2b0] sm:$0xff]
        %v775 = vld [vmem:[%s645 + $0x2b8] sm:$0xff]
        %v776 = vld [vmem:[%s645 + $0x2c0] sm:$0xff]
        %v777 = vld [vmem:[%s645 + $0x2c8] sm:$0xff]
        %v778 = vld [vmem:[%s645 + $0x2d0] sm:$0xff]
        %v779 = vld [vmem:[%s645 + $0x2d8] sm:$0xff]
        %v780 = vld [vmem:[%s645 + $0x2e0] sm:$0xff]
        %v781 = vld [vmem:[%s645 + $0x2e8] sm:$0xff]
        %v782 = vld [vmem:[%s645 + $0x2f0] sm:$0xff]
        %v783 = vld [vmem:[%s645 + $0x2f8] sm:$0xff]
        %v784 = vld [vmem:[%s645 + $0x300] sm:$0xff]
        %v785 = vld [vmem:[%s645 + $0x308] sm:$0xff]
        %v786 = vld [vmem:[%s645 + $0x310] sm:$0xff]
        %v787 = vld [vmem:[%s645 + $0x318] sm:$0xff]
        %v788 = vld [vmem:[%s645 + $0x320] sm:$0xff]
        %v789 = vld [vmem:[%s645 + $0x328] sm:$0xff]
        %v790 = vld [vmem:[%s645 + $0x330] sm:$0xff]
        %v791 = vld [vmem:[%s645 + $0x338] sm:$0xff]
        %v792 = vld [vmem:[%s645 + $0x340] sm:$0xff]
        %v793 = vld [vmem:[%s645 + $0x348] sm:$0xff]
        %v794 = vld [vmem:[%s645 + $0x350] sm:$0xff]
        %v795 = vld [vmem:[%s645 + $0x358] sm:$0xff]
        %v796 = vld [vmem:[%s645 + $0x360] sm:$0xff]
        %v797 = vld [vmem:[%s645 + $0x368] sm:$0xff]
        %v798 = vld [vmem:[%s645 + $0x370] sm:$0xff]
        %v799 = vld [vmem:[%s645 + $0x378] sm:$0xff]
        %v800 = vld [vmem:[%s645 + $0x380] sm:$0xff]
        %v801 = vld [vmem:[%s645 + $0x388] sm:$0xff]
        %v802 = vld [vmem:[%s645 + $0x390] sm:$0xff]
        %v803 = vld [vmem:[%s645 + $0x398] sm:$0xff]
        %v804 = vld [vmem:[%s645 + $0x3a0] sm:$0xff]
        %v805 = vld [vmem:[%s645 + $0x3a8] sm:$0xff]
        %v806 = vld [vmem:[%s645 + $0x3b0] sm:$0xff]
        %v807 = vld [vmem:[%s645 + $0x3b8] sm:$0xff]
        %v808 = vld [vmem:[%s645 + $0x3c0] sm:$0xff]
        %v809 = vld [vmem:[%s645 + $0x3c8] sm:$0xff]
        %v810 = vld [vmem:[%s645 + $0x3d0] sm:$0xff]
        %v811 = vld [vmem:[%s645 + $0x3d8] sm:$0xff]
        %v812 = vld [vmem:[%s645 + $0x3e0] sm:$0xff]
        %v813 = vld [vmem:[%s645 + $0x3e8] sm:$0xff]
        %v814 = vld [vmem:[%s645 + $0x3f0] sm:$0xff]
        %v815 = vld [vmem:[%s645 + $0x3f8] sm:$0xff]
        %v816 = vld [vmem:[%s645 + $0x400] sm:$0xff]
        %v817 = vld [vmem:[%s645 + $0x408] sm:$0xff]
        %v818 = vld [vmem:[%s645 + $0x410] sm:$0xff]
        %v819 = vld [vmem:[%s645 + $0x418] sm:$0xff]
        %v820 = vld [vmem:[%s645 + $0x420] sm:$0xff]
        %v821 = vld [vmem:[%s645 + $0x428] sm:$0xff]
        %v822 = vld [vmem:[%s645 + $0x430] sm:$0xff]
        %v823 = vld [vmem:[%s645 + $0x438] sm:$0xff]
        %v824 = vld [vmem:[%s645 + $0x440] sm:$0xff]
        %v825 = vld [vmem:[%s645 + $0x448] sm:$0xff]
        %v826 = vld [vmem:[%s645 + $0x450] sm:$0xff]
        %v827 = vld [vmem:[%s645 + $0x458] sm:$0xff]
        %v828 = vld [vmem:[%s645 + $0x460] sm:$0xff]
        %v829 = vld [vmem:[%s645 + $0x468] sm:$0xff]
        %v830 = vld [vmem:[%s645 + $0x470] sm:$0xff]
        %v831 = vld [vmem:[%s645 + $0x478] sm:$0xff]
        %v832 = vld [vmem:[%s645 + $0x480] sm:$0xff]
        %v833 = vld [vmem:[%s645 + $0x488] sm:$0xff]
        %v834 = vld [vmem:[%s645 + $0x490] sm:$0xff]
        %v835 = vld [vmem:[%s645 + $0x498] sm:$0xff]
        %v836 = vld [vmem:[%s645 + $0x4a0] sm:$0xff]
        %v837 = vld [vmem:[%s645 + $0x4a8] sm:$0xff]
        %v838 = vld [vmem:[%s645 + $0x4b0] sm:$0xff]
        %v839 = vld [vmem:[%s645 + $0x4b8] sm:$0xff]
        %v840 = vld [vmem:[%s645 + $0x4c0] sm:$0xff]
        %v841 = vld [vmem:[%s645 + $0x4c8] sm:$0xff]
        %v842 = vld [vmem:[%s645 + $0x4d0] sm:$0xff]
        %v843 = vld [vmem:[%s645 + $0x4d8] sm:$0xff]
        %v844 = vld [vmem:[%s645 + $0x4e0] sm:$0xff]
        %v845 = vld [vmem:[%s645 + $0x4e8] sm:$0xff]
        %v846 = vld [vmem:[%s645 + $0x4f0] sm:$0xff]
        %v847 = vld [vmem:[%s645 + $0x4f8] sm:$0xff]
        %v848 = vld [vmem:[%s645 + $0x500] sm:$0xff]
        %v849 = vld [vmem:[%s645 + $0x508] sm:$0xff]
        %v850 = vld [vmem:[%s645 + $0x510] sm:$0xff]
        %v851 = vld [vmem:[%s645 + $0x518] sm:$0xff]
        %v852 = vld [vmem:[%s645 + $0x520] sm:$0xff]
        %v853 = vld [vmem:[%s645 + $0x528] sm:$0xff]
        %v854 = vld [vmem:[%s645 + $0x530] sm:$0xff]
        %v855 = vld [vmem:[%s645 + $0x538] sm:$0xff]
        %v856 = vld [vmem:[%s645 + $0x540] sm:$0xff]
        %v857 = vld [vmem:[%s645 + $0x548] sm:$0xff]
        %v858 = vld [vmem:[%s645 + $0x550] sm:$0xff]
        %v859 = vld [vmem:[%s645 + $0x558] sm:$0xff]
        %v860 = vld [vmem:[%s645 + $0x560] sm:$0xff]
        %v861 = vld [vmem:[%s645 + $0x568] sm:$0xff]
        %v862 = vld [vmem:[%s645 + $0x570] sm:$0xff]
        %v863 = vld [vmem:[%s645 + $0x578] sm:$0xff]
        %v864 = vld [vmem:[%s645 + $0x580] sm:$0xff]
        %v865 = vld [vmem:[%s645 + $0x588] sm:$0xff]
        %v866 = vld [vmem:[%s645 + $0x590] sm:$0xff]
        %v867 = vld [vmem:[%s645 + $0x598] sm:$0xff]
        %v868 = vld [vmem:[%s645 + $0x5a0] sm:$0xff]
        %v869 = vld [vmem:[%s645 + $0x5a8] sm:$0xff]
        %v870 = vld [vmem:[%s645 + $0x5b0] sm:$0xff]
        %v871 = vld [vmem:[%s645 + $0x5b8] sm:$0xff]
        %v872 = vld [vmem:[%s645 + $0x5c0] sm:$0xff]
        %v873 = vld [vmem:[%s645 + $0x5c8] sm:$0xff]
        %v874 = vld [vmem:[%s645 + $0x5d0] sm:$0xff]
        %v875 = vld [vmem:[%s645 + $0x5d8] sm:$0xff]
        %v876 = vld [vmem:[%s645 + $0x5e0] sm:$0xff]
        %v877 = vld [vmem:[%s645 + $0x5e8] sm:$0xff]
        %v878 = vld [vmem:[%s645 + $0x5f0] sm:$0xff]
        %v879 = vld [vmem:[%s645 + $0x5f8] sm:$0xff]
        %v880 = vld [vmem:[%s645 + $0x600] sm:$0xff]
        %v881 = vld [vmem:[%s645 + $0x608] sm:$0xff]
        %v882 = vld [vmem:[%s645 + $0x610] sm:$0xff]
        %v883 = vld [vmem:[%s645 + $0x618] sm:$0xff]
        %v884 = vld [vmem:[%s645 + $0x620] sm:$0xff]
        %v885 = vld [vmem:[%s645 + $0x628] sm:$0xff]
        %v886 = vld [vmem:[%s645 + $0x630] sm:$0xff]
        %v887 = vld [vmem:[%s645 + $0x638] sm:$0xff]
        %v888 = vld [vmem:[%s645 + $0x640] sm:$0xff]
        %v889 = vld [vmem:[%s645 + $0x648] sm:$0xff]
        %v890 = vld [vmem:[%s645 + $0x650] sm:$0xff]
        %v891 = vld [vmem:[%s645 + $0x658] sm:$0xff]
        %v892 = vld [vmem:[%s645 + $0x660] sm:$0xff]
        %v893 = vld [vmem:[%s645 + $0x668] sm:$0xff]
        %v894 = vld [vmem:[%s645 + $0x670] sm:$0xff]
        %v895 = vld [vmem:[%s645 + $0x678] sm:$0xff]
        %v896 = vld [vmem:[%s645 + $0x680] sm:$0xff]
        %v897 = vld [vmem:[%s645 + $0x688] sm:$0xff]
        %v898 = vld [vmem:[%s645 + $0x690] sm:$0xff]
        %v899 = vld [vmem:[%s645 + $0x698] sm:$0xff]
        %v900 = vld [vmem:[%s645 + $0x6a0] sm:$0xff]
        %v901 = vld [vmem:[%s645 + $0x6a8] sm:$0xff]
        %v902 = vld [vmem:[%s645 + $0x6b0] sm:$0xff]
        %v903 = vld [vmem:[%s645 + $0x6b8] sm:$0xff]
        %v904 = vld [vmem:[%s2] sm:$0xff]
        %v905 = vld [vmem:[%s2 + $0x8] sm:$0xff]
        %v906 = vld [vmem:[%s2 + $0x10] sm:$0xff]
        %v907 = vld [vmem:[%s2 + $0x18] sm:$0xff]
        %909 = vset.pattern.permute.xlu0 0
        %910 = vperm.xlu0 %909, %v904
        %v911 = vpop.permute.xlu0 %910
        %914 = vset.pattern.permute.xlu0 0
        %915 = vperm.xlu0 %914, %v905
        %v916 = vpop.permute.xlu0 %915
        %919 = vset.pattern.permute.xlu0 0
        %920 = vperm.xlu0 %919, %v906
        %v921 = vpop.permute.xlu0 %920
        %924 = vset.pattern.permute.xlu0 0
        %925 = vperm.xlu0 %924, %v907
        %v926 = vpop.permute.xlu0 %925
        %v944 = vunpack.c.l.b16 %v672
        %v945 = vunpack.c.h.b16 %v672
        %v946 = vunpack.c.l.b16 %v673
        %v947 = vunpack.c.h.b16 %v673
        %v948 = vunpack.c.l.b16 %v674
        %v949 = vunpack.c.h.b16 %v674
        %v950 = vunpack.c.l.b16 %v675
        %v951 = vunpack.c.l.b16 %v676
        %v952 = vunpack.c.h.b16 %v676
        %v953 = vunpack.c.l.b16 %v677
        %v954 = vunpack.c.h.b16 %v677
        %v955 = vunpack.c.l.b16 %v678
        %v956 = vunpack.c.h.b16 %v678
        %v957 = vunpack.c.l.b16 %v679
        %v958 = vunpack.c.l.b16 %v680
        %v959 = vunpack.c.h.b16 %v680
        %v960 = vunpack.c.l.b16 %v681
        %v961 = vunpack.c.h.b16 %v681
        %v962 = vunpack.c.l.b16 %v682
        %v963 = vunpack.c.h.b16 %v682
        %v964 = vunpack.c.l.b16 %v683
        %v965 = vunpack.c.l.b16 %v684
        %v966 = vunpack.c.h.b16 %v684
        %v967 = vunpack.c.l.b16 %v685
        %v968 = vunpack.c.h.b16 %v685
        %v969 = vunpack.c.l.b16 %v686
        %v970 = vunpack.c.h.b16 %v686
        %v971 = vunpack.c.l.b16 %v687
        %v972 = vpack.c.b16 %v951, %v944
        %v973 = vpack.c.b16 %v952, %v945
        %v974 = vpack.c.b16 %v953, %v946
        %v975 = vpack.c.b16 %v954, %v947
        %v976 = vpack.c.b16 %v955, %v948
        %v977 = vpack.c.b16 %v956, %v949
        %v978 = vpack.c.b16 %v957, %v950
        %v979 = vpack.c.b16 %v965, %v958
        %v980 = vpack.c.b16 %v966, %v959
        %v981 = vpack.c.b16 %v967, %v960
        %v982 = vpack.c.b16 %v968, %v961
        %v983 = vpack.c.b16 %v969, %v962
        %v984 = vpack.c.b16 %v970, %v963
        %v985 = vpack.c.b16 %v971, %v964
        %v1214 = vunpack.c.l.b16 %v688
        %v1215 = vunpack.c.h.b16 %v688
        %v1216 = vunpack.c.l.b16 %v689
        %v1217 = vunpack.c.h.b16 %v689
        %v1218 = vunpack.c.l.b16 %v690
        %v1219 = vunpack.c.h.b16 %v690
        %v1220 = vunpack.c.l.b16 %v691
        %v1221 = vunpack.c.h.b16 %v691
        %v1222 = vunpack.c.l.b16 %v692
        %v1223 = vunpack.c.h.b16 %v692
        %v1224 = vunpack.c.l.b16 %v693
        %v1225 = vunpack.c.h.b16 %v693
        %v1226 = vunpack.c.l.b16 %v694
        %v1227 = vunpack.c.h.b16 %v694
        %v1228 = vunpack.c.l.b16 %v695
        %v1229 = vunpack.c.h.b16 %v695
        %v1230 = vunpack.c.l.b16 %v696
        %v1231 = vunpack.c.h.b16 %v696
        %v1232 = vunpack.c.l.b16 %v697
        %v1233 = vunpack.c.h.b16 %v697
        %v1234 = vunpack.c.l.b16 %v698
        %v1235 = vunpack.c.h.b16 %v698
        %v1236 = vunpack.c.l.b16 %v699
        %v1237 = vunpack.c.h.b16 %v699
        %v1238 = vunpack.c.l.b16 %v700
        %v1239 = vunpack.c.h.b16 %v700
        %v1240 = vunpack.c.l.b16 %v701
        %v1241 = vunpack.c.h.b16 %v701
        %v1242 = vunpack.c.l.b16 %v702
        %v1243 = vunpack.c.h.b16 %v702
        %v1244 = vunpack.c.l.b16 %v703
        %v1245 = vunpack.c.h.b16 %v703
        %v1246 = vunpack.c.l.b16 %v704
        %v1247 = vunpack.c.h.b16 %v704
        %v1248 = vunpack.c.l.b16 %v705
        %v1249 = vunpack.c.h.b16 %v705
        %v1250 = vunpack.c.l.b16 %v706
        %v1251 = vunpack.c.h.b16 %v706
        %v1252 = vunpack.c.l.b16 %v707
        %v1253 = vunpack.c.h.b16 %v707
        %v1254 = vunpack.c.l.b16 %v708
        %v1255 = vunpack.c.h.b16 %v708
        %v1256 = vunpack.c.l.b16 %v709
        %v1257 = vunpack.c.h.b16 %v709
        %v1258 = vunpack.c.l.b16 %v710
        %v1259 = vunpack.c.h.b16 %v710
        %v1260 = vunpack.c.l.b16 %v711
        %v1261 = vunpack.c.h.b16 %v711
        %v1262 = vunpack.c.l.b16 %v712
        %v1263 = vunpack.c.h.b16 %v712
        %v1264 = vunpack.c.l.b16 %v713
        %v1265 = vunpack.c.h.b16 %v713
        %v1266 = vunpack.c.l.b16 %v714
        %v1267 = vunpack.c.h.b16 %v714
        %v1268 = vunpack.c.l.b16 %v715
        %v1269 = vunpack.c.h.b16 %v715
        %v1270 = vunpack.c.l.b16 %v716
        %v1271 = vunpack.c.h.b16 %v716
        %v1272 = vunpack.c.l.b16 %v717
        %v1273 = vunpack.c.h.b16 %v717
        %v1274 = vunpack.c.l.b16 %v718
        %v1275 = vunpack.c.h.b16 %v718
        %v1276 = vunpack.c.l.b16 %v719
        %v1277 = vunpack.c.h.b16 %v719
        %v1278 = vunpack.c.l.b16 %v720
        %v1279 = vunpack.c.h.b16 %v720
        %v1280 = vunpack.c.l.b16 %v721
        %v1281 = vunpack.c.h.b16 %v721
        %v1282 = vunpack.c.l.b16 %v722
        %v1283 = vunpack.c.h.b16 %v722
        %v1284 = vunpack.c.l.b16 %v723
        %v1285 = vunpack.c.h.b16 %v723
        %v1286 = vunpack.c.l.b16 %v724
        %v1287 = vunpack.c.h.b16 %v724
        %v1288 = vunpack.c.l.b16 %v725
        %v1289 = vunpack.c.h.b16 %v725
        %v1290 = vunpack.c.l.b16 %v726
        %v1291 = vunpack.c.h.b16 %v726
        %v1292 = vunpack.c.l.b16 %v727
        %v1293 = vunpack.c.h.b16 %v727
        %v1294 = vunpack.c.l.b16 %v728
        %v1295 = vunpack.c.h.b16 %v728
        %v1296 = vunpack.c.l.b16 %v729
        %v1297 = vunpack.c.h.b16 %v729
        %v1298 = vunpack.c.l.b16 %v730
        %v1299 = vunpack.c.h.b16 %v730
        %v1300 = vunpack.c.l.b16 %v731
        %v1301 = vunpack.c.h.b16 %v731
        %v1302 = vunpack.c.l.b16 %v732
        %v1303 = vunpack.c.h.b16 %v732
        %v1304 = vunpack.c.l.b16 %v733
        %v1305 = vunpack.c.h.b16 %v733
        %v1306 = vunpack.c.l.b16 %v734
        %v1307 = vunpack.c.h.b16 %v734
        %v1308 = vunpack.c.l.b16 %v735
        %v1309 = vunpack.c.h.b16 %v735
        %v1310 = vunpack.c.l.b16 %v736
        %v1311 = vunpack.c.h.b16 %v736
        %v1312 = vunpack.c.l.b16 %v737
        %v1313 = vunpack.c.h.b16 %v737
        %v1314 = vunpack.c.l.b16 %v738
        %v1315 = vunpack.c.h.b16 %v738
        %v1316 = vunpack.c.l.b16 %v739
        %v1317 = vunpack.c.h.b16 %v739
        %v1318 = vunpack.c.l.b16 %v740
        %v1319 = vunpack.c.h.b16 %v740
        %v1320 = vunpack.c.l.b16 %v741
        %v1321 = vunpack.c.h.b16 %v741
        %v1322 = vunpack.c.l.b16 %v742
        %v1323 = vunpack.c.h.b16 %v742
        %v1324 = vunpack.c.l.b16 %v743
        %v1325 = vunpack.c.h.b16 %v743
        %v1326 = vunpack.c.l.b16 %v744
        %v1327 = vunpack.c.h.b16 %v744
        %v1328 = vunpack.c.l.b16 %v745
        %v1329 = vunpack.c.h.b16 %v745
        %v1330 = vunpack.c.l.b16 %v746
        %v1331 = vunpack.c.h.b16 %v746
        %v1332 = vunpack.c.l.b16 %v747
        %v1333 = vunpack.c.h.b16 %v747
        %v1334 = vunpack.c.l.b16 %v748
        %v1335 = vunpack.c.h.b16 %v748
        %v1336 = vunpack.c.l.b16 %v749
        %v1337 = vunpack.c.h.b16 %v749
        %v1338 = vunpack.c.l.b16 %v750
        %v1339 = vunpack.c.h.b16 %v750
        %v1340 = vunpack.c.l.b16 %v751
        %v1341 = vunpack.c.h.b16 %v751
        %v1342 = vunpack.c.l.b16 %v752
        %v1343 = vunpack.c.h.b16 %v752
        %v1344 = vunpack.c.l.b16 %v753
        %v1345 = vunpack.c.h.b16 %v753
        %v1346 = vunpack.c.l.b16 %v754
        %v1347 = vunpack.c.h.b16 %v754
        %v1348 = vunpack.c.l.b16 %v755
        %v1349 = vunpack.c.h.b16 %v755
        %v1350 = vunpack.c.l.b16 %v756
        %v1351 = vunpack.c.h.b16 %v756
        %v1352 = vunpack.c.l.b16 %v757
        %v1353 = vunpack.c.h.b16 %v757
        %v1354 = vunpack.c.l.b16 %v758
        %v1355 = vunpack.c.h.b16 %v758
        %v1356 = vunpack.c.l.b16 %v759
        %v1357 = vunpack.c.h.b16 %v759
        %v1358 = vunpack.c.l.b16 %v760
        %v1359 = vunpack.c.h.b16 %v760
        %v1360 = vunpack.c.l.b16 %v761
        %v1361 = vunpack.c.h.b16 %v761
        %v1362 = vunpack.c.l.b16 %v762
        %v1363 = vunpack.c.h.b16 %v762
        %v1364 = vunpack.c.l.b16 %v763
        %v1365 = vunpack.c.h.b16 %v763
        %v1366 = vunpack.c.l.b16 %v764
        %v1367 = vunpack.c.h.b16 %v764
        %v1368 = vunpack.c.l.b16 %v765
        %v1369 = vunpack.c.h.b16 %v765
        %v1370 = vunpack.c.l.b16 %v766
        %v1371 = vunpack.c.h.b16 %v766
        %v1372 = vunpack.c.l.b16 %v767
        %v1373 = vunpack.c.h.b16 %v767
        %v1374 = vunpack.c.l.b16 %v768
        %v1375 = vunpack.c.h.b16 %v768
        %v1376 = vunpack.c.l.b16 %v769
        %v1377 = vunpack.c.h.b16 %v769
        %v1378 = vunpack.c.l.b16 %v770
        %v1379 = vunpack.c.h.b16 %v770
        %v1380 = vunpack.c.l.b16 %v771
        %v1381 = vunpack.c.h.b16 %v771
        %v1382 = vunpack.c.l.b16 %v772
        %v1383 = vunpack.c.h.b16 %v772
        %v1384 = vunpack.c.l.b16 %v773
        %v1385 = vunpack.c.h.b16 %v773
        %v1386 = vunpack.c.l.b16 %v774
        %v1387 = vunpack.c.h.b16 %v774
        %v1388 = vunpack.c.l.b16 %v775
        %v1389 = vunpack.c.h.b16 %v775
        %v1390 = vunpack.c.l.b16 %v776
        %v1391 = vunpack.c.h.b16 %v776
        %v1392 = vunpack.c.l.b16 %v777
        %v1393 = vunpack.c.h.b16 %v777
        %v1394 = vunpack.c.l.b16 %v778
        %v1395 = vunpack.c.h.b16 %v778
        %v1396 = vunpack.c.l.b16 %v779
        %v1397 = vunpack.c.h.b16 %v779
        %v1398 = vunpack.c.l.b16 %v780
        %v1399 = vunpack.c.h.b16 %v780
        %v1400 = vunpack.c.l.b16 %v781
        %v1401 = vunpack.c.h.b16 %v781
        %v1402 = vunpack.c.l.b16 %v782
        %v1403 = vunpack.c.h.b16 %v782
        %v1404 = vunpack.c.l.b16 %v783
        %v1405 = vunpack.c.h.b16 %v783
        %v1406 = vunpack.c.l.b16 %v784
        %v1407 = vunpack.c.h.b16 %v784
        %v1408 = vunpack.c.l.b16 %v785
        %v1409 = vunpack.c.h.b16 %v785
        %v1410 = vunpack.c.l.b16 %v786
        %v1411 = vunpack.c.h.b16 %v786
        %v1412 = vunpack.c.l.b16 %v787
        %v1413 = vunpack.c.h.b16 %v787
        %v1414 = vunpack.c.l.b16 %v788
        %v1415 = vunpack.c.h.b16 %v788
        %v1416 = vunpack.c.l.b16 %v789
        %v1417 = vunpack.c.h.b16 %v789
        %v1418 = vunpack.c.l.b16 %v790
        %v1419 = vunpack.c.h.b16 %v790
        %v1420 = vunpack.c.l.b16 %v791
        %v1421 = vunpack.c.h.b16 %v791
        %v1422 = vunpack.c.l.b16 %v792
        %v1423 = vunpack.c.h.b16 %v792
        %v1424 = vunpack.c.l.b16 %v793
        %v1425 = vunpack.c.h.b16 %v793
        %v1426 = vunpack.c.l.b16 %v794
        %v1427 = vunpack.c.h.b16 %v794
        %v1428 = vunpack.c.l.b16 %v795
        %v1429 = vunpack.c.h.b16 %v795
        %v1430 = vunpack.c.l.b16 %v796
        %v1431 = vunpack.c.h.b16 %v796
        %v1432 = vunpack.c.l.b16 %v797
        %v1433 = vunpack.c.h.b16 %v797
        %v1434 = vunpack.c.l.b16 %v798
        %v1435 = vunpack.c.h.b16 %v798
        %v1436 = vunpack.c.l.b16 %v799
        %v1437 = vunpack.c.h.b16 %v799
        %v1438 = vunpack.c.l.b16 %v800
        %v1439 = vunpack.c.h.b16 %v800
        %v1440 = vunpack.c.l.b16 %v801
        %v1441 = vunpack.c.h.b16 %v801
        %v1442 = vunpack.c.l.b16 %v802
        %v1443 = vunpack.c.h.b16 %v802
        %v1444 = vunpack.c.l.b16 %v803
        %v1445 = vunpack.c.h.b16 %v803
        %v1446 = vunpack.c.l.b16 %v804
        %v1447 = vunpack.c.h.b16 %v804
        %v1448 = vunpack.c.l.b16 %v805
        %v1449 = vunpack.c.h.b16 %v805
        %v1450 = vunpack.c.l.b16 %v806
        %v1451 = vunpack.c.h.b16 %v806
        %v1452 = vunpack.c.l.b16 %v807
        %v1453 = vunpack.c.h.b16 %v807
        %v1454 = vunpack.c.l.b16 %v808
        %v1455 = vunpack.c.h.b16 %v808
        %v1456 = vunpack.c.l.b16 %v809
        %v1457 = vunpack.c.h.b16 %v809
        %v1458 = vunpack.c.l.b16 %v810
        %v1459 = vunpack.c.h.b16 %v810
        %v1460 = vunpack.c.l.b16 %v811
        %v1461 = vunpack.c.h.b16 %v811
        %v1462 = vunpack.c.l.b16 %v812
        %v1463 = vunpack.c.h.b16 %v812
        %v1464 = vunpack.c.l.b16 %v813
        %v1465 = vunpack.c.h.b16 %v813
        %v1466 = vunpack.c.l.b16 %v814
        %v1467 = vunpack.c.h.b16 %v814
        %v1468 = vunpack.c.l.b16 %v815
        %v1469 = vunpack.c.h.b16 %v815
        %v1470 = vunpack.c.l.b16 %v816
        %v1471 = vunpack.c.h.b16 %v816
        %v1472 = vunpack.c.l.b16 %v817
        %v1473 = vunpack.c.h.b16 %v817
        %v1474 = vunpack.c.l.b16 %v818
        %v1475 = vunpack.c.h.b16 %v818
        %v1476 = vunpack.c.l.b16 %v819
        %v1477 = vunpack.c.h.b16 %v819
        %v1478 = vunpack.c.l.b16 %v820
        %v1479 = vunpack.c.h.b16 %v820
        %v1480 = vunpack.c.l.b16 %v821
        %v1481 = vunpack.c.h.b16 %v821
        %v1482 = vunpack.c.l.b16 %v822
        %v1483 = vunpack.c.h.b16 %v822
        %v1484 = vunpack.c.l.b16 %v823
        %v1485 = vunpack.c.h.b16 %v823
        %v1486 = vunpack.c.l.b16 %v824
        %v1487 = vunpack.c.h.b16 %v824
        %v1488 = vunpack.c.l.b16 %v825
        %v1489 = vunpack.c.h.b16 %v825
        %v1490 = vunpack.c.l.b16 %v826
        %v1491 = vunpack.c.h.b16 %v826
        %v1492 = vunpack.c.l.b16 %v827
        %v1493 = vunpack.c.h.b16 %v827
        %v1494 = vunpack.c.l.b16 %v828
        %v1495 = vunpack.c.h.b16 %v828
        %v1496 = vunpack.c.l.b16 %v829
        %v1497 = vunpack.c.h.b16 %v829
        %v1498 = vunpack.c.l.b16 %v830
        %v1499 = vunpack.c.h.b16 %v830
        %v1500 = vunpack.c.l.b16 %v831
        %v1501 = vunpack.c.h.b16 %v831
        %v1502 = vunpack.c.l.b16 %v832
        %v1503 = vunpack.c.h.b16 %v832
        %v1504 = vunpack.c.l.b16 %v833
        %v1505 = vunpack.c.h.b16 %v833
        %v1506 = vunpack.c.l.b16 %v834
        %v1507 = vunpack.c.h.b16 %v834
        %v1508 = vunpack.c.l.b16 %v835
        %v1509 = vunpack.c.h.b16 %v835
        %v1510 = vunpack.c.l.b16 %v836
        %v1511 = vunpack.c.h.b16 %v836
        %v1512 = vunpack.c.l.b16 %v837
        %v1513 = vunpack.c.h.b16 %v837
        %v1514 = vunpack.c.l.b16 %v838
        %v1515 = vunpack.c.h.b16 %v838
        %v1516 = vunpack.c.l.b16 %v839
        %v1517 = vunpack.c.h.b16 %v839
        %v1518 = vunpack.c.l.b16 %v840
        %v1519 = vunpack.c.h.b16 %v840
        %v1520 = vunpack.c.l.b16 %v841
        %v1521 = vunpack.c.h.b16 %v841
        %v1522 = vunpack.c.l.b16 %v842
        %v1523 = vunpack.c.h.b16 %v842
        %v1524 = vunpack.c.l.b16 %v843
        %v1525 = vunpack.c.h.b16 %v843
        %v1526 = vunpack.c.l.b16 %v844
        %v1527 = vunpack.c.h.b16 %v844
        %v1528 = vunpack.c.l.b16 %v845
        %v1529 = vunpack.c.h.b16 %v845
        %v1530 = vunpack.c.l.b16 %v846
        %v1531 = vunpack.c.h.b16 %v846
        %v1532 = vunpack.c.l.b16 %v847
        %v1533 = vunpack.c.h.b16 %v847
        %v1534 = vunpack.c.l.b16 %v848
        %v1535 = vunpack.c.h.b16 %v848
        %v1536 = vunpack.c.l.b16 %v849
        %v1537 = vunpack.c.h.b16 %v849
        %v1538 = vunpack.c.l.b16 %v850
        %v1539 = vunpack.c.h.b16 %v850
        %v1540 = vunpack.c.l.b16 %v851
        %v1541 = vunpack.c.h.b16 %v851
        %v1542 = vunpack.c.l.b16 %v852
        %v1543 = vunpack.c.h.b16 %v852
        %v1544 = vunpack.c.l.b16 %v853
        %v1545 = vunpack.c.h.b16 %v853
        %v1546 = vunpack.c.l.b16 %v854
        %v1547 = vunpack.c.h.b16 %v854
        %v1548 = vunpack.c.l.b16 %v855
        %v1549 = vunpack.c.h.b16 %v855
        %v1550 = vunpack.c.l.b16 %v856
        %v1551 = vunpack.c.h.b16 %v856
        %v1552 = vunpack.c.l.b16 %v857
        %v1553 = vunpack.c.h.b16 %v857
        %v1554 = vunpack.c.l.b16 %v858
        %v1555 = vunpack.c.h.b16 %v858
        %v1556 = vunpack.c.l.b16 %v859
        %v1557 = vunpack.c.h.b16 %v859
        %v1558 = vunpack.c.l.b16 %v860
        %v1559 = vunpack.c.h.b16 %v860
        %v1560 = vunpack.c.l.b16 %v861
        %v1561 = vunpack.c.h.b16 %v861
        %v1562 = vunpack.c.l.b16 %v862
        %v1563 = vunpack.c.h.b16 %v862
        %v1564 = vunpack.c.l.b16 %v863
        %v1565 = vunpack.c.h.b16 %v863
        %v1566 = vunpack.c.l.b16 %v864
        %v1567 = vunpack.c.h.b16 %v864
        %v1568 = vunpack.c.l.b16 %v865
        %v1569 = vunpack.c.h.b16 %v865
        %v1570 = vunpack.c.l.b16 %v866
        %v1571 = vunpack.c.h.b16 %v866
        %v1572 = vunpack.c.l.b16 %v867
        %v1573 = vunpack.c.h.b16 %v867
        %v1574 = vunpack.c.l.b16 %v868
        %v1575 = vunpack.c.h.b16 %v868
        %v1576 = vunpack.c.l.b16 %v869
        %v1577 = vunpack.c.h.b16 %v869
        %v1578 = vunpack.c.l.b16 %v870
        %v1579 = vunpack.c.h.b16 %v870
        %v1580 = vunpack.c.l.b16 %v871
        %v1581 = vunpack.c.h.b16 %v871
        %v1582 = vunpack.c.l.b16 %v872
        %v1583 = vunpack.c.h.b16 %v872
        %v1584 = vunpack.c.l.b16 %v873
        %v1585 = vunpack.c.h.b16 %v873
        %v1586 = vunpack.c.l.b16 %v874
        %v1587 = vunpack.c.h.b16 %v874
        %v1588 = vunpack.c.l.b16 %v875
        %v1589 = vunpack.c.h.b16 %v875
        %v1590 = vunpack.c.l.b16 %v876
        %v1591 = vunpack.c.h.b16 %v876
        %v1592 = vunpack.c.l.b16 %v877
        %v1593 = vunpack.c.h.b16 %v877
        %v1594 = vunpack.c.l.b16 %v878
        %v1595 = vunpack.c.h.b16 %v878
        %v1596 = vunpack.c.l.b16 %v879
        %v1597 = vunpack.c.h.b16 %v879
        %v1598 = vunpack.c.l.b16 %v880
        %v1599 = vunpack.c.h.b16 %v880
        %v1600 = vunpack.c.l.b16 %v881
        %v1601 = vunpack.c.h.b16 %v881
        %v1602 = vunpack.c.l.b16 %v882
        %v1603 = vunpack.c.h.b16 %v882
        %v1604 = vunpack.c.l.b16 %v883
        %v1605 = vunpack.c.h.b16 %v883
        %v1606 = vunpack.c.l.b16 %v884
        %v1607 = vunpack.c.h.b16 %v884
        %v1608 = vunpack.c.l.b16 %v885
        %v1609 = vunpack.c.h.b16 %v885
        %v1610 = vunpack.c.l.b16 %v886
        %v1611 = vunpack.c.h.b16 %v886
        %v1612 = vunpack.c.l.b16 %v887
        %v1613 = vunpack.c.h.b16 %v887
        %v1614 = vunpack.c.l.b16 %v888
        %v1615 = vunpack.c.h.b16 %v888
        %v1616 = vunpack.c.l.b16 %v889
        %v1617 = vunpack.c.h.b16 %v889
        %v1618 = vunpack.c.l.b16 %v890
        %v1619 = vunpack.c.h.b16 %v890
        %v1620 = vunpack.c.l.b16 %v891
        %v1621 = vunpack.c.h.b16 %v891
        %v1622 = vunpack.c.l.b16 %v892
        %v1623 = vunpack.c.h.b16 %v892
        %v1624 = vunpack.c.l.b16 %v893
        %v1625 = vunpack.c.h.b16 %v893
        %v1626 = vunpack.c.l.b16 %v894
        %v1627 = vunpack.c.h.b16 %v894
        %v1628 = vunpack.c.l.b16 %v895
        %v1629 = vunpack.c.h.b16 %v895
        %v1630 = vunpack.c.l.b16 %v896
        %v1631 = vunpack.c.h.b16 %v896
        %v1632 = vunpack.c.l.b16 %v897
        %v1633 = vunpack.c.h.b16 %v897
        %v1634 = vunpack.c.l.b16 %v898
        %v1635 = vunpack.c.h.b16 %v898
        %v1636 = vunpack.c.l.b16 %v899
        %v1637 = vunpack.c.h.b16 %v899
        %v1638 = vunpack.c.l.b16 %v900
        %v1639 = vunpack.c.h.b16 %v900
        %v1640 = vunpack.c.l.b16 %v901
        %v1641 = vunpack.c.h.b16 %v901
        %v1642 = vunpack.c.l.b16 %v902
        %v1643 = vunpack.c.h.b16 %v902
        %v1644 = vunpack.c.l.b16 %v903
        %v1645 = vunpack.c.h.b16 %v903
        %v1646 = vpack.c.b16 %v1218, %v1214
        %v1647 = vpack.c.b16 %v1219, %v1215
        %v1648 = vpack.c.b16 %v1220, %v1216
        %v1649 = vpack.c.b16 %v1221, %v1217
        %v1650 = vpack.c.b16 %v1226, %v1222
        %v1651 = vpack.c.b16 %v1227, %v1223
        %v1652 = vpack.c.b16 %v1228, %v1224
        %v1653 = vpack.c.b16 %v1229, %v1225
        %v1654 = vpack.c.b16 %v1234, %v1230
        %v1655 = vpack.c.b16 %v1235, %v1231
        %v1656 = vpack.c.b16 %v1236, %v1232
        %v1657 = vpack.c.b16 %v1237, %v1233
        %v1658 = vpack.c.b16 %v1242, %v1238
        %v1659 = vpack.c.b16 %v1243, %v1239
        %v1660 = vpack.c.b16 %v1244, %v1240
        %v1661 = vpack.c.b16 %v1245, %v1241
        %v1662 = vpack.c.b16 %v1250, %v1246
        %v1663 = vpack.c.b16 %v1251, %v1247
        %v1664 = vpack.c.b16 %v1252, %v1248
        %v1665 = vpack.c.b16 %v1253, %v1249
        %v1666 = vpack.c.b16 %v1258, %v1254
        %v1667 = vpack.c.b16 %v1259, %v1255
        %v1668 = vpack.c.b16 %v1260, %v1256
        %v1669 = vpack.c.b16 %v1261, %v1257
        %v1670 = vpack.c.b16 %v1266, %v1262
        %v1671 = vpack.c.b16 %v1267, %v1263
        %v1672 = vpack.c.b16 %v1268, %v1264
        %v1673 = vpack.c.b16 %v1269, %v1265
        %v1674 = vpack.c.b16 %v1274, %v1270
        %v1675 = vpack.c.b16 %v1275, %v1271
        %v1676 = vpack.c.b16 %v1276, %v1272
        %v1677 = vpack.c.b16 %v1277, %v1273
        %v1678 = vpack.c.b16 %v1282, %v1278
        %v1679 = vpack.c.b16 %v1283, %v1279
        %v1680 = vpack.c.b16 %v1284, %v1280
        %v1681 = vpack.c.b16 %v1285, %v1281
        %v1682 = vpack.c.b16 %v1290, %v1286
        %v1683 = vpack.c.b16 %v1291, %v1287
        %v1684 = vpack.c.b16 %v1292, %v1288
        %v1685 = vpack.c.b16 %v1293, %v1289
        %v1686 = vpack.c.b16 %v1298, %v1294
        %v1687 = vpack.c.b16 %v1299, %v1295
        %v1688 = vpack.c.b16 %v1300, %v1296
        %v1689 = vpack.c.b16 %v1301, %v1297
        %v1690 = vpack.c.b16 %v1306, %v1302
        %v1691 = vpack.c.b16 %v1307, %v1303
        %v1692 = vpack.c.b16 %v1308, %v1304
        %v1693 = vpack.c.b16 %v1309, %v1305
        %v1694 = vpack.c.b16 %v1314, %v1310
        %v1695 = vpack.c.b16 %v1315, %v1311
        %v1696 = vpack.c.b16 %v1316, %v1312
        %v1697 = vpack.c.b16 %v1317, %v1313
        %v1698 = vpack.c.b16 %v1322, %v1318
        %v1699 = vpack.c.b16 %v1323, %v1319
        %v1700 = vpack.c.b16 %v1324, %v1320
        %v1701 = vpack.c.b16 %v1325, %v1321
        %v1702 = vpack.c.b16 %v1330, %v1326
        %v1703 = vpack.c.b16 %v1331, %v1327
        %v1704 = vpack.c.b16 %v1332, %v1328
        %v1705 = vpack.c.b16 %v1333, %v1329
        %v1706 = vpack.c.b16 %v1338, %v1334
        %v1707 = vpack.c.b16 %v1339, %v1335
        %v1708 = vpack.c.b16 %v1340, %v1336
        %v1709 = vpack.c.b16 %v1341, %v1337
        %v1710 = vpack.c.b16 %v1346, %v1342
        %v1711 = vpack.c.b16 %v1347, %v1343
        %v1712 = vpack.c.b16 %v1348, %v1344
        %v1713 = vpack.c.b16 %v1349, %v1345
        %v1714 = vpack.c.b16 %v1354, %v1350
        %v1715 = vpack.c.b16 %v1355, %v1351
        %v1716 = vpack.c.b16 %v1356, %v1352
        %v1717 = vpack.c.b16 %v1357, %v1353
        %v1718 = vpack.c.b16 %v1362, %v1358
        %v1719 = vpack.c.b16 %v1363, %v1359
        %v1720 = vpack.c.b16 %v1364, %v1360
        %v1721 = vpack.c.b16 %v1365, %v1361
        %v1722 = vpack.c.b16 %v1370, %v1366
        %v1723 = vpack.c.b16 %v1371, %v1367
        %v1724 = vpack.c.b16 %v1372, %v1368
        %v1725 = vpack.c.b16 %v1373, %v1369
        %v1726 = vpack.c.b16 %v1378, %v1374
        %v1727 = vpack.c.b16 %v1379, %v1375
        %v1728 = vpack.c.b16 %v1380, %v1376
        %v1729 = vpack.c.b16 %v1381, %v1377
        %v1730 = vpack.c.b16 %v1386, %v1382
        %v1731 = vpack.c.b16 %v1387, %v1383
        %v1732 = vpack.c.b16 %v1388, %v1384
        %v1733 = vpack.c.b16 %v1389, %v1385
        %v1734 = vpack.c.b16 %v1394, %v1390
        %v1735 = vpack.c.b16 %v1395, %v1391
        %v1736 = vpack.c.b16 %v1396, %v1392
        %v1737 = vpack.c.b16 %v1397, %v1393
        %v1738 = vpack.c.b16 %v1402, %v1398
        %v1739 = vpack.c.b16 %v1403, %v1399
        %v1740 = vpack.c.b16 %v1404, %v1400
        %v1741 = vpack.c.b16 %v1405, %v1401
        %v1742 = vpack.c.b16 %v1410, %v1406
        %v1743 = vpack.c.b16 %v1411, %v1407
        %v1744 = vpack.c.b16 %v1412, %v1408
        %v1745 = vpack.c.b16 %v1413, %v1409
        %v1746 = vpack.c.b16 %v1418, %v1414
        %v1747 = vpack.c.b16 %v1419, %v1415
        %v1748 = vpack.c.b16 %v1420, %v1416
        %v1749 = vpack.c.b16 %v1421, %v1417
        %v1750 = vpack.c.b16 %v1426, %v1422
        %v1751 = vpack.c.b16 %v1427, %v1423
        %v1752 = vpack.c.b16 %v1428, %v1424
        %v1753 = vpack.c.b16 %v1429, %v1425
        %v1754 = vpack.c.b16 %v1434, %v1430
        %v1755 = vpack.c.b16 %v1435, %v1431
        %v1756 = vpack.c.b16 %v1436, %v1432
        %v1757 = vpack.c.b16 %v1437, %v1433
        %v1758 = vpack.c.b16 %v1442, %v1438
        %v1759 = vpack.c.b16 %v1443, %v1439
        %v1760 = vpack.c.b16 %v1444, %v1440
        %v1761 = vpack.c.b16 %v1445, %v1441
        %v1762 = vpack.c.b16 %v1450, %v1446
        %v1763 = vpack.c.b16 %v1451, %v1447
        %v1764 = vpack.c.b16 %v1452, %v1448
        %v1765 = vpack.c.b16 %v1453, %v1449
        %v1766 = vpack.c.b16 %v1458, %v1454
        %v1767 = vpack.c.b16 %v1459, %v1455
        %v1768 = vpack.c.b16 %v1460, %v1456
        %v1769 = vpack.c.b16 %v1461, %v1457
        %v1770 = vpack.c.b16 %v1466, %v1462
        %v1771 = vpack.c.b16 %v1467, %v1463
        %v1772 = vpack.c.b16 %v1468, %v1464
        %v1773 = vpack.c.b16 %v1469, %v1465
        %v1774 = vpack.c.b16 %v1474, %v1470
        %v1775 = vpack.c.b16 %v1475, %v1471
        %v1776 = vpack.c.b16 %v1476, %v1472
        %v1777 = vpack.c.b16 %v1477, %v1473
        %v1778 = vpack.c.b16 %v1482, %v1478
        %v1779 = vpack.c.b16 %v1483, %v1479
        %v1780 = vpack.c.b16 %v1484, %v1480
        %v1781 = vpack.c.b16 %v1485, %v1481
        %v1782 = vpack.c.b16 %v1490, %v1486
        %v1783 = vpack.c.b16 %v1491, %v1487
        %v1784 = vpack.c.b16 %v1492, %v1488
        %v1785 = vpack.c.b16 %v1493, %v1489
        %v1786 = vpack.c.b16 %v1498, %v1494
        %v1787 = vpack.c.b16 %v1499, %v1495
        %v1788 = vpack.c.b16 %v1500, %v1496
        %v1789 = vpack.c.b16 %v1501, %v1497
        %v1790 = vpack.c.b16 %v1506, %v1502
        %v1791 = vpack.c.b16 %v1507, %v1503
        %v1792 = vpack.c.b16 %v1508, %v1504
        %v1793 = vpack.c.b16 %v1509, %v1505
        %v1794 = vpack.c.b16 %v1514, %v1510
        %v1795 = vpack.c.b16 %v1515, %v1511
        %v1796 = vpack.c.b16 %v1516, %v1512
        %v1797 = vpack.c.b16 %v1517, %v1513
        %v1798 = vpack.c.b16 %v1522, %v1518
        %v1799 = vpack.c.b16 %v1523, %v1519
        %v1800 = vpack.c.b16 %v1524, %v1520
        %v1801 = vpack.c.b16 %v1525, %v1521
        %v1802 = vpack.c.b16 %v1530, %v1526
        %v1803 = vpack.c.b16 %v1531, %v1527
        %v1804 = vpack.c.b16 %v1532, %v1528
        %v1805 = vpack.c.b16 %v1533, %v1529
        %v1806 = vpack.c.b16 %v1538, %v1534
        %v1807 = vpack.c.b16 %v1539, %v1535
        %v1808 = vpack.c.b16 %v1540, %v1536
        %v1809 = vpack.c.b16 %v1541, %v1537
        %v1810 = vpack.c.b16 %v1546, %v1542
        %v1811 = vpack.c.b16 %v1547, %v1543
        %v1812 = vpack.c.b16 %v1548, %v1544
        %v1813 = vpack.c.b16 %v1549, %v1545
        %v1814 = vpack.c.b16 %v1554, %v1550
        %v1815 = vpack.c.b16 %v1555, %v1551
        %v1816 = vpack.c.b16 %v1556, %v1552
        %v1817 = vpack.c.b16 %v1557, %v1553
        %v1818 = vpack.c.b16 %v1562, %v1558
        %v1819 = vpack.c.b16 %v1563, %v1559
        %v1820 = vpack.c.b16 %v1564, %v1560
        %v1821 = vpack.c.b16 %v1565, %v1561
        %v1822 = vpack.c.b16 %v1570, %v1566
        %v1823 = vpack.c.b16 %v1571, %v1567
        %v1824 = vpack.c.b16 %v1572, %v1568
        %v1825 = vpack.c.b16 %v1573, %v1569
        %v1826 = vpack.c.b16 %v1578, %v1574
        %v1827 = vpack.c.b16 %v1579, %v1575
        %v1828 = vpack.c.b16 %v1580, %v1576
        %v1829 = vpack.c.b16 %v1581, %v1577
        %v1830 = vpack.c.b16 %v1586, %v1582
        %v1831 = vpack.c.b16 %v1587, %v1583
        %v1832 = vpack.c.b16 %v1588, %v1584
        %v1833 = vpack.c.b16 %v1589, %v1585
        %v1834 = vpack.c.b16 %v1594, %v1590
        %v1835 = vpack.c.b16 %v1595, %v1591
        %v1836 = vpack.c.b16 %v1596, %v1592
        %v1837 = vpack.c.b16 %v1597, %v1593
        %v1838 = vpack.c.b16 %v1602, %v1598
        %v1839 = vpack.c.b16 %v1603, %v1599
        %v1840 = vpack.c.b16 %v1604, %v1600
        %v1841 = vpack.c.b16 %v1605, %v1601
        %v1842 = vpack.c.b16 %v1610, %v1606
        %v1843 = vpack.c.b16 %v1611, %v1607
        %v1844 = vpack.c.b16 %v1612, %v1608
        %v1845 = vpack.c.b16 %v1613, %v1609
        %v1846 = vpack.c.b16 %v1618, %v1614
        %v1847 = vpack.c.b16 %v1619, %v1615
        %v1848 = vpack.c.b16 %v1620, %v1616
        %v1849 = vpack.c.b16 %v1621, %v1617
        %v1850 = vpack.c.b16 %v1626, %v1622
        %v1851 = vpack.c.b16 %v1627, %v1623
        %v1852 = vpack.c.b16 %v1628, %v1624
        %v1853 = vpack.c.b16 %v1629, %v1625
        %v1854 = vpack.c.b16 %v1634, %v1630
        %v1855 = vpack.c.b16 %v1635, %v1631
        %v1856 = vpack.c.b16 %v1636, %v1632
        %v1857 = vpack.c.b16 %v1637, %v1633
        %v1858 = vpack.c.b16 %v1642, %v1638
        %v1859 = vpack.c.b16 %v1643, %v1639
        %v1860 = vpack.c.b16 %v1644, %v1640
        %v1861 = vpack.c.b16 %v1645, %v1641
        %vm2078 = vcmask 785408
        %v2080 = vsel %vm2078, %v978, 0
        %v2083 = vsel %vm2078, %v985, 0
        %2085 = vmatpush.bf16.msra.mxu0 %v1674
        %2086 = vmatpush.bf16.msra.mxu0 %v1670
        %2087 = vmatpush.bf16.msra.mxu0 %v1666
        %2088 = vmatpush.bf16.msra.mxu0 %v1662
        %2089 = vmatpush.bf16.msra.mxu0 %v1658
        %2090 = vmatpush.bf16.msra.mxu0 %v1654
        %2091 = vmatpush.bf16.msra.mxu0 %v1650
        %2092 = vmatpush.bf16.msra.mxu0 %v1646
        %2093 = vmatmul.bf16.gmra.mxu0 %v972
        %v2094 = vpop.f32.mrf.mxu0
        %v2095 = vadd.f32 %v911, %v2094
        %v2096 = vpop.f32.mrf.mxu0
        %v2097 = vadd.f32 %v916, %v2096
        %2098 = vmatmul.bf16.gmra.mxu0 %v979
        %v2099 = vpop.f32.mrf.mxu0
        %v2100 = vadd.f32 %v921, %v2099
        %v2101 = vpop.f32.mrf.mxu0
        %v2102 = vadd.f32 %v926, %v2101
        %2103 = vdwg.mxu0
        %2104 = vmatpush.bf16.msra.mxu0 %v1706
        %2105 = vmatpush.bf16.msra.mxu0 %v1702
        %2106 = vmatpush.bf16.msra.mxu0 %v1698
        %2107 = vmatpush.bf16.msra.mxu0 %v1694
        %2108 = vmatpush.bf16.msra.mxu0 %v1690
        %2109 = vmatpush.bf16.msra.mxu0 %v1686
        %2110 = vmatpush.bf16.msra.mxu0 %v1682
        %2111 = vmatpush.bf16.msra.mxu0 %v1678
        %2112 = vmatmul.bf16.gmra.mxu0 %v973
        %v2113 = vpop.f32.mrf.mxu0
        %v2114 = vadd.f32 %v2095, %v2113
        %v2115 = vpop.f32.mrf.mxu0
        %v2116 = vadd.f32 %v2097, %v2115
        %2117 = vmatmul.bf16.gmra.mxu0 %v980
        %v2118 = vpop.f32.mrf.mxu0
        %v2119 = vadd.f32 %v2100, %v2118
        %v2120 = vpop.f32.mrf.mxu0
        %v2121 = vadd.f32 %v2102, %v2120
        %2122 = vdwg.mxu0
        %2123 = vmatpush.bf16.msra.mxu0 %v1738
        %2124 = vmatpush.bf16.msra.mxu0 %v1734
        %2125 = vmatpush.bf16.msra.mxu0 %v1730
        %2126 = vmatpush.bf16.msra.mxu0 %v1726
        %2127 = vmatpush.bf16.msra.mxu0 %v1722
        %2128 = vmatpush.bf16.msra.mxu0 %v1718
        %2129 = vmatpush.bf16.msra.mxu0 %v1714
        %2130 = vmatpush.bf16.msra.mxu0 %v1710
        %2131 = vmatmul.bf16.gmra.mxu0 %v974
        %v2132 = vpop.f32.mrf.mxu0
        %v2133 = vadd.f32 %v2114, %v2132
        %v2134 = vpop.f32.mrf.mxu0
        %v2135 = vadd.f32 %v2116, %v2134
        %2136 = vmatmul.bf16.gmra.mxu0 %v981
        %v2137 = vpop.f32.mrf.mxu0
        %v2138 = vadd.f32 %v2119, %v2137
        %v2139 = vpop.f32.mrf.mxu0
        %v2140 = vadd.f32 %v2121, %v2139
        %2141 = vdwg.mxu0
        %2142 = vmatpush.bf16.msra.mxu0 %v1770
        %2143 = vmatpush.bf16.msra.mxu0 %v1766
        %2144 = vmatpush.bf16.msra.mxu0 %v1762
        %2145 = vmatpush.bf16.msra.mxu0 %v1758
        %2146 = vmatpush.bf16.msra.mxu0 %v1754
        %2147 = vmatpush.bf16.msra.mxu0 %v1750
        %2148 = vmatpush.bf16.msra.mxu0 %v1746
        %2149 = vmatpush.bf16.msra.mxu0 %v1742
        %2150 = vmatmul.bf16.gmra.mxu0 %v975
        %v2151 = vpop.f32.mrf.mxu0
        %v2152 = vadd.f32 %v2133, %v2151
        %v2153 = vpop.f32.mrf.mxu0
        %v2154 = vadd.f32 %v2135, %v2153
        %2155 = vmatmul.bf16.gmra.mxu0 %v982
        %v2156 = vpop.f32.mrf.mxu0
        %v2157 = vadd.f32 %v2138, %v2156
        %v2158 = vpop.f32.mrf.mxu0
        %v2159 = vadd.f32 %v2140, %v2158
        %2160 = vdwg.mxu0
        %2161 = vmatpush.bf16.msra.mxu0 %v1802
        %2162 = vmatpush.bf16.msra.mxu0 %v1798
        %2163 = vmatpush.bf16.msra.mxu0 %v1794
        %2164 = vmatpush.bf16.msra.mxu0 %v1790
        %2165 = vmatpush.bf16.msra.mxu0 %v1786
        %2166 = vmatpush.bf16.msra.mxu0 %v1782
        %2167 = vmatpush.bf16.msra.mxu0 %v1778
        %2168 = vmatpush.bf16.msra.mxu0 %v1774
        %2169 = vmatmul.bf16.gmra.mxu0 %v976
        %v2170 = vpop.f32.mrf.mxu0
        %v2171 = vadd.f32 %v2152, %v2170
        %v2172 = vpop.f32.mrf.mxu0
        %v2173 = vadd.f32 %v2154, %v2172
        %2174 = vmatmul.bf16.gmra.mxu0 %v983
        %v2175 = vpop.f32.mrf.mxu0
        %v2176 = vadd.f32 %v2157, %v2175
        %v2177 = vpop.f32.mrf.mxu0
        %v2178 = vadd.f32 %v2159, %v2177
        %2179 = vdwg.mxu0
        %2180 = vmatpush.bf16.msra.mxu0 %v1834
        %2181 = vmatpush.bf16.msra.mxu0 %v1830
        %2182 = vmatpush.bf16.msra.mxu0 %v1826
        %2183 = vmatpush.bf16.msra.mxu0 %v1822
        %2184 = vmatpush.bf16.msra.mxu0 %v1818
        %2185 = vmatpush.bf16.msra.mxu0 %v1814
        %2186 = vmatpush.bf16.msra.mxu0 %v1810
        %2187 = vmatpush.bf16.msra.mxu0 %v1806
        %2188 = vmatmul.bf16.gmra.mxu0 %v977
        %v2189 = vpop.f32.mrf.mxu0
        %v2190 = vadd.f32 %v2171, %v2189
        %v2191 = vpop.f32.mrf.mxu0
        %v2192 = vadd.f32 %v2173, %v2191
        %2193 = vmatmul.bf16.gmra.mxu0 %v984
        %v2194 = vpop.f32.mrf.mxu0
        %v2195 = vadd.f32 %v2176, %v2194
        %v2196 = vpop.f32.mrf.mxu0
        %v2197 = vadd.f32 %v2178, %v2196
        %2198 = vdwg.mxu0
        %2199 = vmatpush.bf16.msra.mxu0 0
        %2200 = vmatpush.bf16.msra.mxu0 0
        %2201 = vmatpush.bf16.msra.mxu0 %v1858
        %2202 = vmatpush.bf16.msra.mxu0 %v1854
        %2203 = vmatpush.bf16.msra.mxu0 %v1850
        %2204 = vmatpush.bf16.msra.mxu0 %v1846
        %2205 = vmatpush.bf16.msra.mxu0 %v1842
        %2206 = vmatpush.bf16.msra.mxu0 %v1838
        %2207 = vmatmul.bf16.gmra.mxu0 %v2080
        %v2208 = vpop.f32.mrf.mxu0
        %v2209 = vadd.f32 %v2190, %v2208
        %v2210 = vpop.f32.mrf.mxu0
        %v2211 = vadd.f32 %v2192, %v2210
        %2212 = vmatmul.bf16.gmra.mxu0 %v2083
        %v2213 = vpop.f32.mrf.mxu0
        %v2214 = vadd.f32 %v2195, %v2213
        %v2215 = vpop.f32.mrf.mxu0
        %v2216 = vadd.f32 %v2197, %v2215
        %2217 = vdwg.mxu0
        %2218 = vmatpush.bf16.msra.mxu0 %v1675
        %2219 = vmatpush.bf16.msra.mxu0 %v1671
        %2220 = vmatpush.bf16.msra.mxu0 %v1667
        %2221 = vmatpush.bf16.msra.mxu0 %v1663
        %2222 = vmatpush.bf16.msra.mxu0 %v1659
        %2223 = vmatpush.bf16.msra.mxu0 %v1655
        %2224 = vmatpush.bf16.msra.mxu0 %v1651
        %2225 = vmatpush.bf16.msra.mxu0 %v1647
        %2226 = vmatmul.bf16.gmra.mxu0 %v972
        %v2227 = vpop.f32.mrf.mxu0
        %v2228 = vadd.f32 %v911, %v2227
        %v2229 = vpop.f32.mrf.mxu0
        %v2230 = vadd.f32 %v916, %v2229
        %2231 = vmatmul.bf16.gmra.mxu0 %v979
        %v2232 = vpop.f32.mrf.mxu0
        %v2233 = vadd.f32 %v921, %v2232
        %v2234 = vpop.f32.mrf.mxu0
        %v2235 = vadd.f32 %v926, %v2234
        %2236 = vdwg.mxu0
        %2237 = vmatpush.bf16.msra.mxu0 %v1707
        %2238 = vmatpush.bf16.msra.mxu0 %v1703
        %2239 = vmatpush.bf16.msra.mxu0 %v1699
        %2240 = vmatpush.bf16.msra.mxu0 %v1695
        %2241 = vmatpush.bf16.msra.mxu0 %v1691
        %2242 = vmatpush.bf16.msra.mxu0 %v1687
        %2243 = vmatpush.bf16.msra.mxu0 %v1683
        %2244 = vmatpush.bf16.msra.mxu0 %v1679
        %2245 = vmatmul.bf16.gmra.mxu0 %v973
        %v2246 = vpop.f32.mrf.mxu0
        %v2247 = vadd.f32 %v2228, %v2246
        %v2248 = vpop.f32.mrf.mxu0
        %v2249 = vadd.f32 %v2230, %v2248
        %2250 = vmatmul.bf16.gmra.mxu0 %v980
        %v2251 = vpop.f32.mrf.mxu0
        %v2252 = vadd.f32 %v2233, %v2251
        %v2253 = vpop.f32.mrf.mxu0
        %v2254 = vadd.f32 %v2235, %v2253
        %2255 = vdwg.mxu0
        %2256 = vmatpush.bf16.msra.mxu0 %v1739
        %2257 = vmatpush.bf16.msra.mxu0 %v1735
        %2258 = vmatpush.bf16.msra.mxu0 %v1731
        %2259 = vmatpush.bf16.msra.mxu0 %v1727
        %2260 = vmatpush.bf16.msra.mxu0 %v1723
        %2261 = vmatpush.bf16.msra.mxu0 %v1719
        %2262 = vmatpush.bf16.msra.mxu0 %v1715
        %2263 = vmatpush.bf16.msra.mxu0 %v1711
        %2264 = vmatmul.bf16.gmra.mxu0 %v974
        %v2265 = vpop.f32.mrf.mxu0
        %v2266 = vadd.f32 %v2247, %v2265
        %v2267 = vpop.f32.mrf.mxu0
        %v2268 = vadd.f32 %v2249, %v2267
        %2269 = vmatmul.bf16.gmra.mxu0 %v981
        %v2270 = vpop.f32.mrf.mxu0
        %v2271 = vadd.f32 %v2252, %v2270
        %v2272 = vpop.f32.mrf.mxu0
        %v2273 = vadd.f32 %v2254, %v2272
        %2274 = vdwg.mxu0
        %2275 = vmatpush.bf16.msra.mxu0 %v1771
        %2276 = vmatpush.bf16.msra.mxu0 %v1767
        %2277 = vmatpush.bf16.msra.mxu0 %v1763
        %2278 = vmatpush.bf16.msra.mxu0 %v1759
        %2279 = vmatpush.bf16.msra.mxu0 %v1755
        %2280 = vmatpush.bf16.msra.mxu0 %v1751
        %2281 = vmatpush.bf16.msra.mxu0 %v1747
        %2282 = vmatpush.bf16.msra.mxu0 %v1743
        %2283 = vmatmul.bf16.gmra.mxu0 %v975
        %v2284 = vpop.f32.mrf.mxu0
        %v2285 = vadd.f32 %v2266, %v2284
        %v2286 = vpop.f32.mrf.mxu0
        %v2287 = vadd.f32 %v2268, %v2286
        %2288 = vmatmul.bf16.gmra.mxu0 %v982
        %v2289 = vpop.f32.mrf.mxu0
        %v2290 = vadd.f32 %v2271, %v2289
        %v2291 = vpop.f32.mrf.mxu0
        %v2292 = vadd.f32 %v2273, %v2291
        %2293 = vdwg.mxu0
        %2294 = vmatpush.bf16.msra.mxu0 %v1803
        %2295 = vmatpush.bf16.msra.mxu0 %v1799
        %2296 = vmatpush.bf16.msra.mxu0 %v1795
        %2297 = vmatpush.bf16.msra.mxu0 %v1791
        %2298 = vmatpush.bf16.msra.mxu0 %v1787
        %2299 = vmatpush.bf16.msra.mxu0 %v1783
        %2300 = vmatpush.bf16.msra.mxu0 %v1779
        %2301 = vmatpush.bf16.msra.mxu0 %v1775
        %2302 = vmatmul.bf16.gmra.mxu0 %v976
        %v2303 = vpop.f32.mrf.mxu0
        %v2304 = vadd.f32 %v2285, %v2303
        %v2305 = vpop.f32.mrf.mxu0
        %v2306 = vadd.f32 %v2287, %v2305
        %2307 = vmatmul.bf16.gmra.mxu0 %v983
        %v2308 = vpop.f32.mrf.mxu0
        %v2309 = vadd.f32 %v2290, %v2308
        %v2310 = vpop.f32.mrf.mxu0
        %v2311 = vadd.f32 %v2292, %v2310
        %2312 = vdwg.mxu0
        %2313 = vmatpush.bf16.msra.mxu0 %v1835
        %2314 = vmatpush.bf16.msra.mxu0 %v1831
        %2315 = vmatpush.bf16.msra.mxu0 %v1827
        %2316 = vmatpush.bf16.msra.mxu0 %v1823
        %2317 = vmatpush.bf16.msra.mxu0 %v1819
        %2318 = vmatpush.bf16.msra.mxu0 %v1815
        %2319 = vmatpush.bf16.msra.mxu0 %v1811
        %2320 = vmatpush.bf16.msra.mxu0 %v1807
        %2321 = vmatmul.bf16.gmra.mxu0 %v977
        %v2322 = vpop.f32.mrf.mxu0
        %v2323 = vadd.f32 %v2304, %v2322
        %v2324 = vpop.f32.mrf.mxu0
        %v2325 = vadd.f32 %v2306, %v2324
        %2326 = vmatmul.bf16.gmra.mxu0 %v984
        %v2327 = vpop.f32.mrf.mxu0
        %v2328 = vadd.f32 %v2309, %v2327
        %v2329 = vpop.f32.mrf.mxu0
        %v2330 = vadd.f32 %v2311, %v2329
        %2331 = vdwg.mxu0
        %2332 = vmatpush.bf16.msra.mxu0 0
        %2333 = vmatpush.bf16.msra.mxu0 0
        %2334 = vmatpush.bf16.msra.mxu0 %v1859
        %2335 = vmatpush.bf16.msra.mxu0 %v1855
        %2336 = vmatpush.bf16.msra.mxu0 %v1851
        %2337 = vmatpush.bf16.msra.mxu0 %v1847
        %2338 = vmatpush.bf16.msra.mxu0 %v1843
        %2339 = vmatpush.bf16.msra.mxu0 %v1839
        %2340 = vmatmul.bf16.gmra.mxu0 %v2080
        %v2341 = vpop.f32.mrf.mxu0
        %v2342 = vadd.f32 %v2323, %v2341
        %v2343 = vpop.f32.mrf.mxu0
        %v2344 = vadd.f32 %v2325, %v2343
        %2345 = vmatmul.bf16.gmra.mxu0 %v2083
        %v2346 = vpop.f32.mrf.mxu0
        %v2347 = vadd.f32 %v2328, %v2346
        %v2348 = vpop.f32.mrf.mxu0
        %v2349 = vadd.f32 %v2330, %v2348
        %2350 = vdwg.mxu0
        %2351 = vmatpush.bf16.msra.mxu0 %v1676
        %2352 = vmatpush.bf16.msra.mxu0 %v1672
        %2353 = vmatpush.bf16.msra.mxu0 %v1668
        %2354 = vmatpush.bf16.msra.mxu0 %v1664
        %2355 = vmatpush.bf16.msra.mxu0 %v1660
        %2356 = vmatpush.bf16.msra.mxu0 %v1656
        %2357 = vmatpush.bf16.msra.mxu0 %v1652
        %2358 = vmatpush.bf16.msra.mxu0 %v1648
        %2359 = vmatmul.bf16.gmra.mxu0 %v972
        %v2360 = vpop.f32.mrf.mxu0
        %v2361 = vadd.f32 %v911, %v2360
        %v2362 = vpop.f32.mrf.mxu0
        %v2363 = vadd.f32 %v916, %v2362
        %2364 = vmatmul.bf16.gmra.mxu0 %v979
        %v2365 = vpop.f32.mrf.mxu0
        %v2366 = vadd.f32 %v921, %v2365
        %v2367 = vpop.f32.mrf.mxu0
        %v2368 = vadd.f32 %v926, %v2367
        %2369 = vdwg.mxu0
        %2370 = vmatpush.bf16.msra.mxu0 %v1708
        %2371 = vmatpush.bf16.msra.mxu0 %v1704
        %2372 = vmatpush.bf16.msra.mxu0 %v1700
        %2373 = vmatpush.bf16.msra.mxu0 %v1696
        %2374 = vmatpush.bf16.msra.mxu0 %v1692
        %2375 = vmatpush.bf16.msra.mxu0 %v1688
        %2376 = vmatpush.bf16.msra.mxu0 %v1684
        %2377 = vmatpush.bf16.msra.mxu0 %v1680
        %2378 = vmatmul.bf16.gmra.mxu0 %v973
        %v2379 = vpop.f32.mrf.mxu0
        %v2380 = vadd.f32 %v2361, %v2379
        %v2381 = vpop.f32.mrf.mxu0
        %v2382 = vadd.f32 %v2363, %v2381
        %2383 = vmatmul.bf16.gmra.mxu0 %v980
        %v2384 = vpop.f32.mrf.mxu0
        %v2385 = vadd.f32 %v2366, %v2384
        %v2386 = vpop.f32.mrf.mxu0
        %v2387 = vadd.f32 %v2368, %v2386
        %2388 = vdwg.mxu0
        %2389 = vmatpush.bf16.msra.mxu0 %v1740
        %2390 = vmatpush.bf16.msra.mxu0 %v1736
        %2391 = vmatpush.bf16.msra.mxu0 %v1732
        %2392 = vmatpush.bf16.msra.mxu0 %v1728
        %2393 = vmatpush.bf16.msra.mxu0 %v1724
        %2394 = vmatpush.bf16.msra.mxu0 %v1720
        %2395 = vmatpush.bf16.msra.mxu0 %v1716
        %2396 = vmatpush.bf16.msra.mxu0 %v1712
        %2397 = vmatmul.bf16.gmra.mxu0 %v974
        %v2398 = vpop.f32.mrf.mxu0
        %v2399 = vadd.f32 %v2380, %v2398
        %v2400 = vpop.f32.mrf.mxu0
        %v2401 = vadd.f32 %v2382, %v2400
        %2402 = vmatmul.bf16.gmra.mxu0 %v981
        %v2403 = vpop.f32.mrf.mxu0
        %v2404 = vadd.f32 %v2385, %v2403
        %v2405 = vpop.f32.mrf.mxu0
        %v2406 = vadd.f32 %v2387, %v2405
        %2407 = vdwg.mxu0
        %2408 = vmatpush.bf16.msra.mxu0 %v1772
        %2409 = vmatpush.bf16.msra.mxu0 %v1768
        %2410 = vmatpush.bf16.msra.mxu0 %v1764
        %2411 = vmatpush.bf16.msra.mxu0 %v1760
        %2412 = vmatpush.bf16.msra.mxu0 %v1756
        %2413 = vmatpush.bf16.msra.mxu0 %v1752
        %2414 = vmatpush.bf16.msra.mxu0 %v1748
        %2415 = vmatpush.bf16.msra.mxu0 %v1744
        %2416 = vmatmul.bf16.gmra.mxu0 %v975
        %v2417 = vpop.f32.mrf.mxu0
        %v2418 = vadd.f32 %v2399, %v2417
        %v2419 = vpop.f32.mrf.mxu0
        %v2420 = vadd.f32 %v2401, %v2419
        %2421 = vmatmul.bf16.gmra.mxu0 %v982
        %v2422 = vpop.f32.mrf.mxu0
        %v2423 = vadd.f32 %v2404, %v2422
        %v2424 = vpop.f32.mrf.mxu0
        %v2425 = vadd.f32 %v2406, %v2424
        %2426 = vdwg.mxu0
        %2427 = vmatpush.bf16.msra.mxu0 %v1804
        %2428 = vmatpush.bf16.msra.mxu0 %v1800
        %2429 = vmatpush.bf16.msra.mxu0 %v1796
        %2430 = vmatpush.bf16.msra.mxu0 %v1792
        %2431 = vmatpush.bf16.msra.mxu0 %v1788
        %2432 = vmatpush.bf16.msra.mxu0 %v1784
        %2433 = vmatpush.bf16.msra.mxu0 %v1780
        %2434 = vmatpush.bf16.msra.mxu0 %v1776
        %2435 = vmatmul.bf16.gmra.mxu0 %v976
        %v2436 = vpop.f32.mrf.mxu0
        %v2437 = vadd.f32 %v2418, %v2436
        %v2438 = vpop.f32.mrf.mxu0
        %v2439 = vadd.f32 %v2420, %v2438
        %2440 = vmatmul.bf16.gmra.mxu0 %v983
        %v2441 = vpop.f32.mrf.mxu0
        %v2442 = vadd.f32 %v2423, %v2441
        %v2443 = vpop.f32.mrf.mxu0
        %v2444 = vadd.f32 %v2425, %v2443
        %2445 = vdwg.mxu0
        %2446 = vmatpush.bf16.msra.mxu0 %v1836
        %2447 = vmatpush.bf16.msra.mxu0 %v1832
        %2448 = vmatpush.bf16.msra.mxu0 %v1828
        %2449 = vmatpush.bf16.msra.mxu0 %v1824
        %2450 = vmatpush.bf16.msra.mxu0 %v1820
        %2451 = vmatpush.bf16.msra.mxu0 %v1816
        %2452 = vmatpush.bf16.msra.mxu0 %v1812
        %2453 = vmatpush.bf16.msra.mxu0 %v1808
        %2454 = vmatmul.bf16.gmra.mxu0 %v977
        %v2455 = vpop.f32.mrf.mxu0
        %v2456 = vadd.f32 %v2437, %v2455
        %v2457 = vpop.f32.mrf.mxu0
        %v2458 = vadd.f32 %v2439, %v2457
        %2459 = vmatmul.bf16.gmra.mxu0 %v984
        %v2460 = vpop.f32.mrf.mxu0
        %v2461 = vadd.f32 %v2442, %v2460
        %v2462 = vpop.f32.mrf.mxu0
        %v2463 = vadd.f32 %v2444, %v2462
        %2464 = vdwg.mxu0
        %2465 = vmatpush.bf16.msra.mxu0 0
        %2466 = vmatpush.bf16.msra.mxu0 0
        %2467 = vmatpush.bf16.msra.mxu0 %v1860
        %2468 = vmatpush.bf16.msra.mxu0 %v1856
        %2469 = vmatpush.bf16.msra.mxu0 %v1852
        %2470 = vmatpush.bf16.msra.mxu0 %v1848
        %2471 = vmatpush.bf16.msra.mxu0 %v1844
        %2472 = vmatpush.bf16.msra.mxu0 %v1840
        %2473 = vmatmul.bf16.gmra.mxu0 %v2080
        %v2474 = vpop.f32.mrf.mxu0
        %v2475 = vadd.f32 %v2456, %v2474
        %v2476 = vpop.f32.mrf.mxu0
        %v2477 = vadd.f32 %v2458, %v2476
        %2478 = vmatmul.bf16.gmra.mxu0 %v2083
        %v2479 = vpop.f32.mrf.mxu0
        %v2480 = vadd.f32 %v2461, %v2479
        %v2481 = vpop.f32.mrf.mxu0
        %v2482 = vadd.f32 %v2463, %v2481
        %2483 = vdwg.mxu0
        %2484 = vmatpush.bf16.msra.mxu0 %v1677
        %2485 = vmatpush.bf16.msra.mxu0 %v1673
        %2486 = vmatpush.bf16.msra.mxu0 %v1669
        %2487 = vmatpush.bf16.msra.mxu0 %v1665
        %2488 = vmatpush.bf16.msra.mxu0 %v1661
        %2489 = vmatpush.bf16.msra.mxu0 %v1657
        %2490 = vmatpush.bf16.msra.mxu0 %v1653
        %2491 = vmatpush.bf16.msra.mxu0 %v1649
        %2492 = vmatmul.bf16.gmra.mxu0 %v972
        %v2493 = vpop.f32.mrf.mxu0
        %v2494 = vadd.f32 %v911, %v2493
        %v2495 = vpop.f32.mrf.mxu0
        %v2496 = vadd.f32 %v916, %v2495
        %2497 = vmatmul.bf16.gmra.mxu0 %v979
        %v2498 = vpop.f32.mrf.mxu0
        %v2499 = vadd.f32 %v921, %v2498
        %v2500 = vpop.f32.mrf.mxu0
        %v2501 = vadd.f32 %v926, %v2500
        %2502 = vdwg.mxu0
        %2503 = vmatpush.bf16.msra.mxu0 %v1709
        %2504 = vmatpush.bf16.msra.mxu0 %v1705
        %2505 = vmatpush.bf16.msra.mxu0 %v1701
        %2506 = vmatpush.bf16.msra.mxu0 %v1697
        %2507 = vmatpush.bf16.msra.mxu0 %v1693
        %2508 = vmatpush.bf16.msra.mxu0 %v1689
        %2509 = vmatpush.bf16.msra.mxu0 %v1685
        %2510 = vmatpush.bf16.msra.mxu0 %v1681
        %2511 = vmatmul.bf16.gmra.mxu0 %v973
        %v2512 = vpop.f32.mrf.mxu0
        %v2513 = vadd.f32 %v2494, %v2512
        %v2514 = vpop.f32.mrf.mxu0
        %v2515 = vadd.f32 %v2496, %v2514
        %2516 = vmatmul.bf16.gmra.mxu0 %v980
        %v2517 = vpop.f32.mrf.mxu0
        %v2518 = vadd.f32 %v2499, %v2517
        %v2519 = vpop.f32.mrf.mxu0
        %v2520 = vadd.f32 %v2501, %v2519
        %2521 = vdwg.mxu0
        %2522 = vmatpush.bf16.msra.mxu0 %v1741
        %2523 = vmatpush.bf16.msra.mxu0 %v1737
        %2524 = vmatpush.bf16.msra.mxu0 %v1733
        %2525 = vmatpush.bf16.msra.mxu0 %v1729
        %2526 = vmatpush.bf16.msra.mxu0 %v1725
        %2527 = vmatpush.bf16.msra.mxu0 %v1721
        %2528 = vmatpush.bf16.msra.mxu0 %v1717
        %2529 = vmatpush.bf16.msra.mxu0 %v1713
        %2530 = vmatmul.bf16.gmra.mxu0 %v974
        %v2531 = vpop.f32.mrf.mxu0
        %v2532 = vadd.f32 %v2513, %v2531
        %v2533 = vpop.f32.mrf.mxu0
        %v2534 = vadd.f32 %v2515, %v2533
        %2535 = vmatmul.bf16.gmra.mxu0 %v981
        %v2536 = vpop.f32.mrf.mxu0
        %v2537 = vadd.f32 %v2518, %v2536
        %v2538 = vpop.f32.mrf.mxu0
        %v2539 = vadd.f32 %v2520, %v2538
        %2540 = vdwg.mxu0
        %2541 = vmatpush.bf16.msra.mxu0 %v1773
        %2542 = vmatpush.bf16.msra.mxu0 %v1769
        %2543 = vmatpush.bf16.msra.mxu0 %v1765
        %2544 = vmatpush.bf16.msra.mxu0 %v1761
        %2545 = vmatpush.bf16.msra.mxu0 %v1757
        %2546 = vmatpush.bf16.msra.mxu0 %v1753
        %2547 = vmatpush.bf16.msra.mxu0 %v1749
        %2548 = vmatpush.bf16.msra.mxu0 %v1745
        %2549 = vmatmul.bf16.gmra.mxu0 %v975
        %v2550 = vpop.f32.mrf.mxu0
        %v2551 = vadd.f32 %v2532, %v2550
        %v2552 = vpop.f32.mrf.mxu0
        %v2553 = vadd.f32 %v2534, %v2552
        %2554 = vmatmul.bf16.gmra.mxu0 %v982
        %v2555 = vpop.f32.mrf.mxu0
        %v2556 = vadd.f32 %v2537, %v2555
        %v2557 = vpop.f32.mrf.mxu0
        %v2558 = vadd.f32 %v2539, %v2557
        %2559 = vdwg.mxu0
        %2560 = vmatpush.bf16.msra.mxu0 %v1805
        %2561 = vmatpush.bf16.msra.mxu0 %v1801
        %2562 = vmatpush.bf16.msra.mxu0 %v1797
        %2563 = vmatpush.bf16.msra.mxu0 %v1793
        %2564 = vmatpush.bf16.msra.mxu0 %v1789
        %2565 = vmatpush.bf16.msra.mxu0 %v1785
        %2566 = vmatpush.bf16.msra.mxu0 %v1781
        %2567 = vmatpush.bf16.msra.mxu0 %v1777
        %2568 = vmatmul.bf16.gmra.mxu0 %v976
        %v2569 = vpop.f32.mrf.mxu0
        %v2570 = vadd.f32 %v2551, %v2569
        %v2571 = vpop.f32.mrf.mxu0
        %v2572 = vadd.f32 %v2553, %v2571
        %2573 = vmatmul.bf16.gmra.mxu0 %v983
        %v2574 = vpop.f32.mrf.mxu0
        %v2575 = vadd.f32 %v2556, %v2574
        %v2576 = vpop.f32.mrf.mxu0
        %v2577 = vadd.f32 %v2558, %v2576
        %2578 = vdwg.mxu0
        %2579 = vmatpush.bf16.msra.mxu0 %v1837
        %2580 = vmatpush.bf16.msra.mxu0 %v1833
        %2581 = vmatpush.bf16.msra.mxu0 %v1829
        %2582 = vmatpush.bf16.msra.mxu0 %v1825
        %2583 = vmatpush.bf16.msra.mxu0 %v1821
        %2584 = vmatpush.bf16.msra.mxu0 %v1817
        %2585 = vmatpush.bf16.msra.mxu0 %v1813
        %2586 = vmatpush.bf16.msra.mxu0 %v1809
        %2587 = vmatmul.bf16.gmra.mxu0 %v977
        %v2588 = vpop.f32.mrf.mxu0
        %v2589 = vadd.f32 %v2570, %v2588
        %v2590 = vpop.f32.mrf.mxu0
        %v2591 = vadd.f32 %v2572, %v2590
        %2592 = vmatmul.bf16.gmra.mxu0 %v984
        %v2593 = vpop.f32.mrf.mxu0
        %v2594 = vadd.f32 %v2575, %v2593
        %v2595 = vpop.f32.mrf.mxu0
        %v2596 = vadd.f32 %v2577, %v2595
        %2597 = vdwg.mxu0
        %2598 = vmatpush.bf16.msra.mxu0 0
        %2599 = vmatpush.bf16.msra.mxu0 0
        %2600 = vmatpush.bf16.msra.mxu0 %v1861
        %2601 = vmatpush.bf16.msra.mxu0 %v1857
        %2602 = vmatpush.bf16.msra.mxu0 %v1853
        %2603 = vmatpush.bf16.msra.mxu0 %v1849
        %2604 = vmatpush.bf16.msra.mxu0 %v1845
        %2605 = vmatpush.bf16.msra.mxu0 %v1841
        %2606 = vmatmul.bf16.gmra.mxu0 %v2080
        %v2607 = vpop.f32.mrf.mxu0
        %v2608 = vadd.f32 %v2589, %v2607
        %v2609 = vpop.f32.mrf.mxu0
        %v2610 = vadd.f32 %v2591, %v2609
        %2611 = vmatmul.bf16.gmra.mxu0 %v2083
        %v2612 = vpop.f32.mrf.mxu0
        %v2613 = vadd.f32 %v2594, %v2612
        %v2614 = vpop.f32.mrf.mxu0
        %v2615 = vadd.f32 %v2596, %v2614
        %2616 = vdwg.mxu0
        %v2617 = vmax.f32 %v2209, 0.0
        %v2618 = vmax.f32 %v2342, 0.0
        %v2619 = vmax.f32 %v2475, 0.0
        %v2620 = vmax.f32 %v2608, 0.0
        %v2621 = vmax.f32 %v2211, 0.0
        %v2622 = vmax.f32 %v2344, 0.0
        %v2623 = vmax.f32 %v2477, 0.0
        %v2624 = vmax.f32 %v2610, 0.0
        %v2625 = vmax.f32 %v2214, 0.0
        %v2626 = vmax.f32 %v2347, 0.0
        %v2627 = vmax.f32 %v2480, 0.0
        %v2628 = vmax.f32 %v2613, 0.0
        %v2629 = vmax.f32 %v2216, 0.0
        %v2630 = vmax.f32 %v2349, 0.0
        %v2631 = vmax.f32 %v2482, 0.0
        %v2632 = vmax.f32 %v2615, 0.0
        %v2633 = vld [vmem:[%s3] sm:$0xf]
        %v2634 = vld [vmem:[%s3 + $0x4] sm:$0xf]
        %v2635 = vld [vmem:[%s3 + $0x8] sm:$0xf]
        %v2636 = vld [vmem:[%s3 + $0xc] sm:$0xf]
        %v2637 = vpack.c.bf16 %v2621, %v2617
        %v2638 = vpack.c.bf16 %v2622, %v2618
        %v2639 = vpack.c.bf16 %v2623, %v2619
        %v2640 = vpack.c.bf16 %v2624, %v2620
        %v2641 = vpack.c.bf16 %v2629, %v2625
        %v2642 = vpack.c.bf16 %v2630, %v2626
        %v2643 = vpack.c.bf16 %v2631, %v2627
        %v2644 = vpack.c.bf16 %v2632, %v2628
        %v2645 = vld [vmem:[%s4] sm:$0xff]
        %v2646 = vld [vmem:[%s4 + $0x8] sm:$0xff]
        %v2647 = vld [vmem:[%s4 + $0x10] sm:$0xff]
        %v2648 = vld [vmem:[%s4 + $0x18] sm:$0xff]
        %2650 = vset.pattern.permute.xlu0 0
        %2651 = vperm.xlu0 %2650, %v2645
        %v2652 = vpop.permute.xlu0 %2651
        %2655 = vset.pattern.permute.xlu0 0
        %2656 = vperm.xlu0 %2655, %v2646
        %v2657 = vpop.permute.xlu0 %2656
        %2660 = vset.pattern.permute.xlu0 0
        %2661 = vperm.xlu0 %2660, %v2647
        %v2662 = vpop.permute.xlu0 %2661
        %2665 = vset.pattern.permute.xlu0 0
        %2666 = vperm.xlu0 %2665, %v2648
        %v2667 = vpop.permute.xlu0 %2666
        %v2673 = vunpack.c.l.b16 %v2633
        %v2674 = vunpack.c.l.b16 %v2634
        %v2675 = vunpack.c.l.b16 %v2635
        %v2676 = vunpack.c.l.b16 %v2636
        %v2677 = vpack.c.b16 %v2674, %v2673
        %v2678 = vpack.c.b16 %v2676, %v2675
        %vm2679 = vcmask 261120
        %v2681 = vsel %vm2679, %v2677, 0
        %v2684 = vsel %vm2679, %v2678, 0
        %2686 = vmatpush.bf16.msra.mxu0 0
        %2687 = vmatpush.bf16.msra.mxu0 0
        %2688 = vmatpush.bf16.msra.mxu0 0
        %2689 = vmatpush.bf16.msra.mxu0 0
        %2690 = vmatpush.bf16.msra.mxu0 0
        %2691 = vmatpush.bf16.msra.mxu0 0
        %2692 = vmatpush.bf16.msra.mxu0 %v2641
        %2693 = vmatpush.bf16.msra.mxu0 %v2637
        %2694 = vmatmul.bf16.gmra.mxu0 %v2681
        %v2695 = vpop.f32.mrf.mxu0
        %v2696 = vadd.f32 %v2652, %v2695
        %v2697 = vpop.f32.mrf.mxu0
        %v2698 = vadd.f32 %v2657, %v2697
        %2699 = vmatmul.bf16.gmra.mxu0 %v2684
        %v2700 = vpop.f32.mrf.mxu0
        %v2701 = vadd.f32 %v2662, %v2700
        %v2702 = vpop.f32.mrf.mxu0
        %v2703 = vadd.f32 %v2667, %v2702
        %2704 = vdwg.mxu0
        %2705 = vmatpush.bf16.msra.mxu0 0
        %2706 = vmatpush.bf16.msra.mxu0 0
        %2707 = vmatpush.bf16.msra.mxu0 0
        %2708 = vmatpush.bf16.msra.mxu0 0
        %2709 = vmatpush.bf16.msra.mxu0 0
        %2710 = vmatpush.bf16.msra.mxu0 0
        %2711 = vmatpush.bf16.msra.mxu0 %v2642
        %2712 = vmatpush.bf16.msra.mxu0 %v2638
        %2713 = vmatmul.bf16.gmra.mxu0 %v2681
        %v2714 = vpop.f32.mrf.mxu0
        %v2715 = vadd.f32 %v2652, %v2714
        %v2716 = vpop.f32.mrf.mxu0
        %v2717 = vadd.f32 %v2657, %v2716
        %2718 = vmatmul.bf16.gmra.mxu0 %v2684
        %v2719 = vpop.f32.mrf.mxu0
        %v2720 = vadd.f32 %v2662, %v2719
        %v2721 = vpop.f32.mrf.mxu0
        %v2722 = vadd.f32 %v2667, %v2721
        %2723 = vdwg.mxu0
        %2724 = vmatpush.bf16.msra.mxu0 0
        %2725 = vmatpush.bf16.msra.mxu0 0
        %2726 = vmatpush.bf16.msra.mxu0 0
        %2727 = vmatpush.bf16.msra.mxu0 0
        %2728 = vmatpush.bf16.msra.mxu0 0
        %2729 = vmatpush.bf16.msra.mxu0 0
        %2730 = vmatpush.bf16.msra.mxu0 %v2643
        %2731 = vmatpush.bf16.msra.mxu0 %v2639
        %2732 = vmatmul.bf16.gmra.mxu0 %v2681
        %v2733 = vpop.f32.mrf.mxu0
        %v2734 = vadd.f32 %v2652, %v2733
        %v2735 = vpop.f32.mrf.mxu0
        %v2736 = vadd.f32 %v2657, %v2735
        %2737 = vmatmul.bf16.gmra.mxu0 %v2684
        %v2738 = vpop.f32.mrf.mxu0
        %v2739 = vadd.f32 %v2662, %v2738
        %v2740 = vpop.f32.mrf.mxu0
        %v2741 = vadd.f32 %v2667, %v2740
        %2742 = vdwg.mxu0
        %2743 = vmatpush.bf16.msra.mxu0 0
        %2744 = vmatpush.bf16.msra.mxu0 0
        %2745 = vmatpush.bf16.msra.mxu0 0
        %2746 = vmatpush.bf16.msra.mxu0 0
        %2747 = vmatpush.bf16.msra.mxu0 0
        %2748 = vmatpush.bf16.msra.mxu0 0
        %2749 = vmatpush.bf16.msra.mxu0 %v2644
        %2750 = vmatpush.bf16.msra.mxu0 %v2640
        %2751 = vmatmul.bf16.gmra.mxu0 %v2681
        %v2752 = vpop.f32.mrf.mxu0
        %v2753 = vadd.f32 %v2652, %v2752
        %v2754 = vpop.f32.mrf.mxu0
        %v2755 = vadd.f32 %v2657, %v2754
        %2756 = vmatmul.bf16.gmra.mxu0 %v2684
        %v2757 = vpop.f32.mrf.mxu0
        %v2758 = vadd.f32 %v2662, %v2757
        %v2759 = vpop.f32.mrf.mxu0
        %v2760 = vadd.f32 %v2667, %v2759
        %2761 = vdwg.mxu0
        %2762 = vst [vmem:[%s668] sm:$0xff] %v2696
        %2763 = vst [vmem:[%s668 + $0x8] sm:$0xff] %v2715
        %2764 = vst [vmem:[%s668 + $0x10] sm:$0xff] %v2734
        %2765 = vst [vmem:[%s668 + $0x18] sm:$0xff] %v2753
        %2766 = vst [vmem:[%s668 + $0x20] sm:$0xff] %v2698
        %2767 = vst [vmem:[%s668 + $0x28] sm:$0xff] %v2717
        %2768 = vst [vmem:[%s668 + $0x30] sm:$0xff] %v2736
        %2769 = vst [vmem:[%s668 + $0x38] sm:$0xff] %v2755
        %2770 = vst [vmem:[%s668 + $0x40] sm:$0xff] %v2701
        %2771 = vst [vmem:[%s668 + $0x48] sm:$0xff] %v2720
        %2772 = vst [vmem:[%s668 + $0x50] sm:$0xff] %v2739
        %2773 = vst [vmem:[%s668 + $0x58] sm:$0xff] %v2758
        %2774 = vst [vmem:[%s668 + $0x60] sm:$0xff] %v2703
        %2775 = vst [vmem:[%s668 + $0x68] sm:$0xff] %v2722
        %2776 = vst [vmem:[%s668 + $0x70] sm:$0xff] %v2741
        %2777 = vst [vmem:[%s668 + $0x78] sm:$0xff] %v2760
        %s2778 = sand.u32 %s134, 1
        %s2779 = sand.u32 %s134, 1
        %s2780 = smul.addr %s2779, 128
        %s2781 = scalar_lea.vmem [#allocation3], %s2780
        // Predicated region
        $region64: #{sparse_kernel3d_forward.1} parent=58 // pred_check
          %p2782 = pneg %p144
        $region65: #{sparse_kernel3d_forward.1} parent=58 // pred_check_branch
          %2784 = sbr.rel (%p2782) target = $region67
        $region66: #{sparse_kernel3d_forward.1} parent=58 // pred_region
          %s2785 = smul.u32 4, %s16
          %s2786 = smul.addr %s2785, 8
          %s2787 = scalar_lea.vmem %s5, %s2786
          // Predicated region
          $region68: #{sparse_kernel3d_forward.1} parent=66 // pred_check
            _
          $region69: #{sparse_kernel3d_forward.1} parent=66 // pred_check_branch
            %2789 = sbr.rel (0) target = $region71
          $region70: #{sparse_kernel3d_forward.1} parent=66 // pred_region
            // Predicated region
            $region72: #{sparse_kernel3d_forward.1} parent=70 // pred_check
              _
            $region73: #{sparse_kernel3d_forward.1} parent=70 // pred_check_branch
              %2791 = sbr.rel (0) target = $region75
            $region74: #{sparse_kernel3d_forward.1} parent=70 // pred_region
              loop: start=0, step=1, limit=1
              $region76: #{sparse_kernel3d_forward.1} parent=74 // loop_pre_header
                _
              $region77: #{sparse_kernel3d_forward.1} parent=74 // loop_header
                %s2793 = sphi 0, %s2797
                %p2794 = scmp.ge.s32.totalorder %s2793, 1
                %s2798 = sphi %s2781, %s2781
                %s2799 = sphi %s2787, %s2787
              $region78: #{sparse_kernel3d_forward.1} parent=74 // loop_header_branch
                %2796 = sbr.rel (%p2794) target = $region82
              $region79: #{sparse_kernel3d_forward.1} parent=74 // loop_body
                %v2800 = vld [vmem:[%s2798] sm:$0xff]
                %2801 = vst [vmem:[%s2799] sm:$0xff] %v2800
                %v2802 = vld [vmem:[%s2798 + $0x8] sm:$0xff]
                %2803 = vst [vmem:[%s2799 + $0x8] sm:$0xff] %v2802
                %v2804 = vld [vmem:[%s2798 + $0x10] sm:$0xff]
                %2805 = vst [vmem:[%s2799 + $0x10] sm:$0xff] %v2804
                %v2806 = vld [vmem:[%s2798 + $0x18] sm:$0xff]
                %2807 = vst [vmem:[%s2799 + $0x18] sm:$0xff] %v2806
                %v2808 = vld [vmem:[%s2798 + $0x20] sm:$0xff]
                %2809 = vst [vmem:[%s2799 + $0x40] sm:$0xff] %v2808
                %v2810 = vld [vmem:[%s2798 + $0x28] sm:$0xff]
                %2811 = vst [vmem:[%s2799 + $0x48] sm:$0xff] %v2810
                %v2812 = vld [vmem:[%s2798 + $0x30] sm:$0xff]
                %2813 = vst [vmem:[%s2799 + $0x50] sm:$0xff] %v2812
                %v2814 = vld [vmem:[%s2798 + $0x38] sm:$0xff]
                %2815 = vst [vmem:[%s2799 + $0x58] sm:$0xff] %v2814
                %v2816 = vld [vmem:[%s2798 + $0x40] sm:$0xff]
                %2817 = vst [vmem:[%s2799 + $0x80] sm:$0xff] %v2816
                %v2818 = vld [vmem:[%s2798 + $0x48] sm:$0xff]
                %2819 = vst [vmem:[%s2799 + $0x88] sm:$0xff] %v2818
                %v2820 = vld [vmem:[%s2798 + $0x50] sm:$0xff]
                %2821 = vst [vmem:[%s2799 + $0x90] sm:$0xff] %v2820
                %v2822 = vld [vmem:[%s2798 + $0x58] sm:$0xff]
                %2823 = vst [vmem:[%s2799 + $0x98] sm:$0xff] %v2822
                %v2824 = vld [vmem:[%s2798 + $0x60] sm:$0xff]
                %2825 = vst [vmem:[%s2799 + $0xc0] sm:$0xff] %v2824
                %v2826 = vld [vmem:[%s2798 + $0x68] sm:$0xff]
                %2827 = vst [vmem:[%s2799 + $0xc8] sm:$0xff] %v2826
                %v2828 = vld [vmem:[%s2798 + $0x70] sm:$0xff]
                %2829 = vst [vmem:[%s2799 + $0xd0] sm:$0xff] %v2828
                %v2830 = vld [vmem:[%s2798 + $0x78] sm:$0xff]
                %2831 = vst [vmem:[%s2799 + $0xd8] sm:$0xff] %v2830
              $region80: #{sparse_kernel3d_forward.1} parent=74 // loop_footer
                %s2797 = sadd.s32 1, %s2793
              $region81: #{sparse_kernel3d_forward.1} parent=74 // loop_footer_branch
                %2792 = sbr.rel target = $region77
              $region82: #{sparse_kernel3d_forward.1} parent=74 // loop_exit
                _
            $region75: #{sparse_kernel3d_forward.1} parent=70 // pred_fallthru
              _
            // Predicated region
            $region83: #{sparse_kernel3d_forward.1} parent=70 // pred_check
              _
            $region84: #{sparse_kernel3d_forward.1} parent=70 // pred_check_branch
              %2833 = sbr.rel target = $region86
            $region85: #{sparse_kernel3d_forward.1} parent=70 // pred_region
              _
            $region86: #{sparse_kernel3d_forward.1} parent=70 // pred_fallthru
              _
          $region71: #{sparse_kernel3d_forward.1} parent=66 // pred_fallthru
            _
          %2834 = vnop
        $region67: #{sparse_kernel3d_forward.1} parent=58 // pred_fallthru
          _
      $region59: #{sparse_kernel3d_forward.1} parent=5 // pred_fallthru
        _
      %p2835 = scmp.le.s32.totalorder 2, %s11
      // Predicated region
      $region87: #{sparse_kernel3d_forward.1} parent=5 // pred_check
        %p2836 = pneg %p2835
      $region88: #{sparse_kernel3d_forward.1} parent=5 // pred_check_branch
        %2838 = sbr.rel (%p2836) target = $region90
      $region89: #{sparse_kernel3d_forward.1} parent=5 // pred_region
        %s2839 = ssub.s32 %s11, 2
        // Predicated region
        $region91: #{sparse_kernel3d_forward.1} parent=89 // pred_check
          %p2840 = pneg %p150
        $region92: #{sparse_kernel3d_forward.1} parent=89 // pred_check_branch
          %2842 = sbr.rel (%p2840) target = $region94
        $region93: #{sparse_kernel3d_forward.1} parent=89 // pred_region
          %s2843 = sand.u32 %s135, 1
          %s2844 = sand.u32 %s135, 1
          %s2845 = smul.addr %s2844, 128
          %s2846 = scalar_lea.vmem [#allocation3], %s2845
        $region94: #{sparse_kernel3d_forward.1} parent=89 // pred_fallthru
          _
      $region90: #{sparse_kernel3d_forward.1} parent=5 // pred_fallthru
        _
    $region6: #{sparse_kernel3d_forward.1} parent=1 // loop_footer
      %s15 = sadd.s32 1, %s11
    $region7: #{sparse_kernel3d_forward.1} parent=1 // loop_footer_branch
      %10 = sbr.rel target = $region3
    $region8: #{sparse_kernel3d_forward.1} parent=1 // loop_exit
      _

</llo_original>
